<compile_context>
chip_gen: v6e
topology: v6e:2x2x1
jax: 0.10.0
libtpu: 0.0.40
codegen_flags: <defaults>
</compile_context>

<pallas_src>
import jax
import jax.numpy as jnp
from jax.experimental import pallas as pl
from jax.experimental.pallas import tpu as pltpu


def _round_up(x, m):
    return (x + m - 1) // m * m


def shopee_img_text_kernel(
    feat_ref,    # [TB, HW, C]  bf16  backbone feature map (batch tile)
    hs_ref,      # [TB, S, H]   bf16  BERT hidden states, pre-summed over hs_idxs
    wmask_ref,   # [TB, S]      f32   attention_mask / (NHS * token_count)
    w1_ref,      # [H, H]       bf16  fc1.weight^T with bn2 folded in
    b1_ref,      # [1, H]       f32   fc1.bias with bn2 folded in
    w2i_ref,     # [C, OUT]     bf16  image rows of fc2.weight^T (1/HW, bn1, bn3 folded)
    w2t_ref,     # [H, OUT]     bf16  text rows of fc2.weight^T (bn3 folded)
    b2_ref,      # [1, OUT]     f32   fc2.bias with bn1/bn3 constants folded
    out_ref,     # [TB, OUT]    f32
):
    # ---- image branch: global average pool (1/HW and bn1 folded into w2_img) ----
    # TODO(synk): PoolingFactory is config-dependent (GeM/GAP/...); GAP assumed here.
    p = jnp.sum(feat_ref[...].astype(jnp.float32), axis=1)            # [TB, C] f32 acc

    # ---- text branch: 'hs-mean' pooling; 1/NHS and 1/count folded into wmask ----
    seq = hs_ref[...].astype(jnp.float32) * wmask_ref[...][:, :, None]  # f32
    y = jnp.sum(seq, axis=1)                                           # [TB, H]
    # fc1 (+ folded bn2): bf16 operands, f32 accumulation on the MXU
    y = jnp.dot(y.astype(jnp.bfloat16), w1_ref[...],
                preferred_element_type=jnp.float32) + b1_ref[...]      # [TB, H]

    # ---- fusion: fc2 as two accumulating dots (no concat), bn3 folded ----
    z = jnp.dot(p.astype(jnp.bfloat16), w2i_ref[...],
                preferred_element_type=jnp.float32)
    z = z + jnp.dot(y.astype(jnp.bfloat16), w2t_ref[...],
                    preferred_element_type=jnp.float32)
    z = z + b2_ref[...]                                                # [TB, OUT]

    # ---- F.normalize: z / max(||z||_2, 1e-12) via rsqrt (EUP slot) ----
    ssq = jnp.sum(z * z, axis=1, keepdims=True)
    out_ref[...] = z * jax.lax.rsqrt(jnp.maximum(ssq, 1e-24))


def fold_params(raw, hw, eps=1e-5):
    """Fold eval-mode BatchNorms (bn1/bn2/bn3) and the exact 1/HW GAP factor
    into the fc weights. Host-side, f32."""
    s1 = raw["bn1_g"] / jnp.sqrt(raw["bn1_v"] + eps)        # [C]
    t1 = raw["bn1_b"] - raw["bn1_m"] * s1
    s2 = raw["bn2_g"] / jnp.sqrt(raw["bn2_v"] + eps)        # [H]
    t2 = raw["bn2_b"] - raw["bn2_m"] * s2
    s3 = raw["bn3_g"] / jnp.sqrt(raw["bn3_v"] + eps)        # [OUT]
    t3 = raw["bn3_b"] - raw["bn3_m"] * s3

    C = s1.shape[0]
    w1t = raw["fc1_w"].T                                    # [H, H]
    w2t_full = raw["fc2_w"].T                               # [C+H, OUT]
    w2_img = w2t_full[:C]                                   # [C, OUT]
    w2_txt = w2t_full[C:]                                   # [H, OUT]

    # fc1 followed by bn2:  y*W1^T + b1 -> scale columns by s2, shift by t2
    w1_f = w1t * s2[None, :]
    b1_f = raw["fc1_b"] * s2 + t2
    # GAP (kernel does a plain sum) + bn1 (post-pool) + fc2 + bn3:
    #   (sum(feat)/HW * s1 + t1) @ W2i + y @ W2t + b2, then *s3 + t3
    w2_img_f = ((s1 / float(hw))[:, None] * w2_img) * s3[None, :]
    w2_txt_f = w2_txt * s3[None, :]
    b2_f = (raw["fc2_b"] + t1 @ w2_img) * s3 + t3

    return dict(
        w1=w1_f.astype(jnp.bfloat16),
        b1=b1_f[None, :].astype(jnp.float32),
        w2_img=w2_img_f.astype(jnp.bfloat16),
        w2_txt=w2_txt_f.astype(jnp.bfloat16),
        b2=b2_f[None, :].astype(jnp.float32),
    )


def shopee_img_text_forward(feat, hs, attn_mask, params):
    """feat: [B, HW, C] (NHWC-flattened backbone fmap), hs: [NHS, B, S, H],
    attn_mask: [B, S] float. Returns [B, 512] L2-normalized embeddings."""
    B, HW, C = feat.shape
    NHS, _, S, H = hs.shape
    OUT = params["b2"].shape[-1]

    # Masked-mean weights: mask / (NHS * token_count), count clamped; 2-D [B, S].
    count = jnp.sum(attn_mask, axis=1, keepdims=True)                  # [B, 1]
    wmask = (attn_mask / (NHS * jnp.maximum(count, 1.0))).astype(jnp.float32)

    # Pre-sum the selected hidden states over NHS in f32 (halves the hs stream),
    # then stream both big inputs as bf16 (kernel accumulates in f32).
    hs_sum = jnp.sum(hs.astype(jnp.float32), axis=0).astype(jnp.bfloat16)  # [B,S,H]
    feat_b = feat.astype(jnp.bfloat16)

    # Tile size from VMEM capacity: 512 rows on 128 MiB chips (v5e/v6e), 256 on
    # v7x (64 MiB; leaves headroom for the f32 reduction temporaries).
    try:
        vmem_bytes = pltpu.get_tpu_info().vmem_capacity_bytes
    except Exception:
        vmem_bytes = 64 * 1024 * 1024
    big_vmem = vmem_bytes >= 96 * 1024 * 1024
    max_tile_b = 512 if big_vmem else 256
    vmem_limit = (96 if big_vmem else 48) * 1024 * 1024

    # Ensure at least 2 grid steps so both v7x TensorCores get work (harmless on
    # the single-TC v5e/v6e); tile_b is a sublane multiple for the f32 blocks.
    tile_b = min(max_tile_b, _round_up(pl.cdiv(max(B, 2), 2), 8))
    Bp = _round_up(B, tile_b)
    if Bp // tile_b < 2:
        Bp = 2 * tile_b
    if Bp != B:
        pad = Bp - B
        feat_b = jnp.pad(feat_b, ((0, pad), (0, 0), (0, 0)))
        hs_sum = jnp.pad(hs_sum, ((0, pad), (0, 0), (0, 0)))
        wmask = jnp.pad(wmask, ((0, pad), (0, 0)))

    grid = (Bp // tile_b,)

    def invariant(shape):  # same block every grid step -> stays resident in VMEM
        return pl.BlockSpec(shape, lambda b: (0,) * len(shape))

    out = pl.pallas_call(
        shopee_img_text_kernel,
        out_shape=jax.ShapeDtypeStruct((Bp, OUT), jnp.float32),
        grid=grid,
        in_specs=[
            pl.BlockSpec((tile_b, HW, C), lambda b: (b, 0, 0)),   # feat (bf16)
            pl.BlockSpec((tile_b, S, H), lambda b: (b, 0, 0)),    # hs (bf16)
            pl.BlockSpec((tile_b, S), lambda b: (b, 0)),          # wmask (f32, 2-D)
            invariant((H, H)),            # w1 (bf16)
            invariant((1, H)),            # b1
            invariant((C, OUT)),          # w2_img (bf16)
            invariant((H, OUT)),          # w2_txt (bf16)
            invariant((1, OUT)),          # b2
        ],
        out_specs=pl.BlockSpec((tile_b, OUT), lambda b: (b, 0)),
        compiler_params=pltpu.CompilerParams(
            dimension_semantics=("parallel",),
            vmem_limit_bytes=vmem_limit,
        ),
    )(feat_b, hs_sum, wmask,
      params["w1"], params["b1"], params["w2_img"], params["w2_txt"], params["b2"])
    return out[:B]


def reference_forward(feat, hs, attn_mask, raw, eps=1e-5):
    """Pure-JAX, unfolded, f32 reference mirroring the PyTorch forward (eval)."""
    s1 = raw["bn1_g"] / jnp.sqrt(raw["bn1_v"] + eps)
    t1 = raw["bn1_b"] - raw["bn1_m"] * s1
    x = feat * s1 + t1                              # bn1
    x = jnp.mean(x, axis=1)                         # GAP
    seq = jnp.mean(hs, axis=0)                      # mean over hs_idxs
    summed = jnp.sum(seq * attn_mask[:, :, None], axis=1)
    y = summed / jnp.sum(attn_mask, axis=1, keepdims=True)
    y = y @ raw["fc1_w"].T + raw["fc1_b"]           # fc1
    s2 = raw["bn2_g"] / jnp.sqrt(raw["bn2_v"] + eps)
    t2 = raw["bn2_b"] - raw["bn2_m"] * s2
    y = y * s2 + t2                                 # bn2
    z = jnp.concatenate([x, y], axis=1) @ raw["fc2_w"].T + raw["fc2_b"]  # fc2
    s3 = raw["bn3_g"] / jnp.sqrt(raw["bn3_v"] + eps)
    t3 = raw["bn3_b"] - raw["bn3_m"] * s3
    z = z * s3 + t3                                 # bn3
    n = jnp.sqrt(jnp.sum(z * z, axis=1, keepdims=True))
    return z / jnp.maximum(n, 1e-12)                # F.normalize


if __name__ == "__main__":
    # Small shapes consistent with the module:
    #   final_in_features C = 128, 8x8 spatial map (HW = 64, NHWC flattened)
    #   bert_hidden_size H = 128, seq_len S = 8, hs_idxs = [-1, -2] -> NHS = 2
    B, C, HW = 2, 128, 64
    S, H, NHS = 8, 128, 2
    OUT = 512

    key = jax.random.PRNGKey(0)
    ks = jax.random.split(key, 10)

    # TODO(synk): timm backbone and HuggingFace BERT have no Pallas equivalent;
    # their outputs (feature map, selected hidden states) are synthesized here.
    feat = jax.random.normal(ks[0], (B, HW, C), jnp.float32)
    hs = jax.random.normal(ks[1], (NHS, B, S, H), jnp.float32)
    attn = jnp.array([[1, 1, 1, 1, 1, 1, 1, 1],
                      [1, 1, 1, 1, 1, 0, 0, 0]], jnp.float32)           # [B, S]

    def xavier_normal(k, shape):
        fan_out, fan_in = shape
        std = (2.0 / (fan_in + fan_out)) ** 0.5
        return std * jax.random.normal(k, shape, jnp.float32)

    # _init_params(): xavier_normal fc weights, zero biases, bn gamma=1 / beta=0.
    # Running stats are randomized (as after training) to exercise the BN folding.
    raw = dict(
        fc1_w=xavier_normal(ks[2], (H, H)),
        fc1_b=jnp.zeros((H,), jnp.float32),
        fc2_w=xavier_normal(ks[3], (OUT, C + H)),
        fc2_b=jnp.zeros((OUT,), jnp.float32),
        bn1_g=jnp.ones((C,), jnp.float32), bn1_b=jnp.zeros((C,), jnp.float32),
        bn1_m=0.1 * jax.random.normal(ks[4], (C,), jnp.float32),
        bn1_v=0.5 + jax.random.uniform(ks[5], (C,), jnp.float32),
        bn2_g=jnp.ones((H,), jnp.float32), bn2_b=jnp.zeros((H,), jnp.float32),
        bn2_m=0.1 * jax.random.normal(ks[6], (H,), jnp.float32),
        bn2_v=0.5 + jax.random.uniform(ks[7], (H,), jnp.float32),
        bn3_g=jnp.ones((OUT,), jnp.float32), bn3_b=jnp.zeros((OUT,), jnp.float32),
        bn3_m=0.1 * jax.random.normal(ks[8], (OUT,), jnp.float32),
        bn3_v=0.5 + jax.random.uniform(ks[9], (OUT,), jnp.float32),
    )

    params = fold_params(raw, hw=HW)
    out = shopee_img_text_forward(feat, hs, attn, params)
    jax.block_until_ready(out)
    assert out.shape == (B, OUT) and out.dtype == jnp.float32

    # Correctness vs. unfolded f32 reference. bf16 weights AND bf16-streamed
    # activations (feat/hs) -> ~1e-3-level deviation expected on the unit-norm
    # 512-d embedding; 5e-3 is a comfortable inference-grade bound.
    ref = reference_forward(feat, hs, attn, raw)
    err = float(jnp.max(jnp.abs(out - ref)))
    assert err < 5e-3, f"max abs error {err}"
    print("KERNEL_OK")
</pallas_src>

<mosaic_0001>
module attributes {stable_mosaic.version = 11 : i64} {
  func.func @shopee_img_text_kernel(%arg0: i32, %arg1: memref<8x64x128xbf16, #tpu.memory_space<vmem>>, %arg2: memref<8x8x128xbf16, #tpu.memory_space<vmem>>, %arg3: memref<8x8xf32, #tpu.memory_space<vmem>>, %arg4: memref<128x128xbf16, #tpu.memory_space<vmem>>, %arg5: memref<1x128xf32, #tpu.memory_space<vmem>>, %arg6: memref<128x512xbf16, #tpu.memory_space<vmem>>, %arg7: memref<128x512xbf16, #tpu.memory_space<vmem>>, %arg8: memref<1x512xf32, #tpu.memory_space<vmem>>, %arg9: memref<8x512xf32, #tpu.memory_space<vmem>>) attributes {dimension_semantics = [#tpu.dimension_semantics<parallel>], iteration_bounds = array<i64: 2>, scalar_prefetch = 0 : i64, scratch_operands = 0 : i64, tpu.core_type = #tpu.core_type<tc>, window_params = [{transform_indices = @transform_0, window_bounds = array<i64: 8, 64, 128>}, {transform_indices = @transform_1, window_bounds = array<i64: 8, 8, 128>}, {transform_indices = @transform_2, window_bounds = array<i64: 8, 8>}, {pipeline_mode = #tpu.pipeline_mode<synchronous>, transform_indices = @transform_3, window_bounds = array<i64: 128, 128>}, {pipeline_mode = #tpu.pipeline_mode<synchronous>, transform_indices = @transform_4, window_bounds = array<i64: 1, 128>}, {pipeline_mode = #tpu.pipeline_mode<synchronous>, transform_indices = @transform_5, window_bounds = array<i64: 128, 512>}, {pipeline_mode = #tpu.pipeline_mode<synchronous>, transform_indices = @transform_6, window_bounds = array<i64: 128, 512>}, {pipeline_mode = #tpu.pipeline_mode<synchronous>, transform_indices = @transform_7, window_bounds = array<i64: 1, 512>}, {transform_indices = @transform_8, window_bounds = array<i64: 8, 512>}]} {
    %c0 = arith.constant 0 : index
    %c0_0 = arith.constant 0 : index
    %c0_1 = arith.constant 0 : index
    %0 = vector.load %arg1[%c0, %c0_0, %c0_1] : memref<8x64x128xbf16, #tpu.memory_space<vmem>>, vector<8x64x128xbf16>
    %1 = arith.extf %0 : vector<8x64x128xbf16> to vector<8x64x128xf32>
    %cst = arith.constant dense<0.000000e+00> : vector<8x128xf32>
    %2 = vector.multi_reduction <add>, %1, %cst [1] : vector<8x64x128xf32> to vector<8x128xf32>
    %c0_2 = arith.constant 0 : index
    %c0_3 = arith.constant 0 : index
    %c0_4 = arith.constant 0 : index
    %3 = vector.load %arg2[%c0_2, %c0_3, %c0_4] : memref<8x8x128xbf16, #tpu.memory_space<vmem>>, vector<8x8x128xbf16>
    %4 = arith.extf %3 : vector<8x8x128xbf16> to vector<8x8x128xf32>
    %c0_5 = arith.constant 0 : index
    %c0_6 = arith.constant 0 : index
    %5 = vector.load %arg3[%c0_5, %c0_6] : memref<8x8xf32, #tpu.memory_space<vmem>>, vector<8x8xf32>
    %6 = vector.shape_cast %5 : vector<8x8xf32> to vector<8x8x1xf32>
    %7 = vector.broadcast %6 : vector<8x8x1xf32> to vector<8x8x128xf32>
    %8 = arith.mulf %4, %7 : vector<8x8x128xf32>
    %cst_7 = arith.constant dense<0.000000e+00> : vector<8x128xf32>
    %9 = vector.multi_reduction <add>, %8, %cst_7 [1] : vector<8x8x128xf32> to vector<8x128xf32>
    %10 = arith.truncf %9 : vector<8x128xf32> to vector<8x128xbf16>
    %c0_8 = arith.constant 0 : index
    %c0_9 = arith.constant 0 : index
    %11 = vector.load %arg4[%c0_8, %c0_9] : memref<128x128xbf16, #tpu.memory_space<vmem>>, vector<128x128xbf16>
    %cst_10 = arith.constant dense<0.000000e+00> : vector<8x128xf32>
    %12 = tpu.matmul %10, %11, %cst_10 {dimension_numbers = #tpu.dot_dimension_numbers<[1], [0], [0], [1], [0, 0, 1, 1], [], []>} : vector<8x128xbf16>, vector<128x128xbf16>, vector<8x128xf32> -> vector<8x128xf32>
    %c0_11 = arith.constant 0 : index
    %c0_12 = arith.constant 0 : index
    %13 = vector.load %arg5[%c0_11, %c0_12] : memref<1x128xf32, #tpu.memory_space<vmem>>, vector<1x128xf32>
    %14 = vector.broadcast %13 : vector<1x128xf32> to vector<8x128xf32>
    %15 = arith.addf %12, %14 : vector<8x128xf32>
    %16 = arith.truncf %2 : vector<8x128xf32> to vector<8x128xbf16>
    %c0_13 = arith.constant 0 : index
    %c0_14 = arith.constant 0 : index
    %17 = vector.load %arg6[%c0_13, %c0_14] : memref<128x512xbf16, #tpu.memory_space<vmem>>, vector<128x512xbf16>
    %cst_15 = arith.constant dense<0.000000e+00> : vector<8x512xf32>
    %18 = tpu.matmul %16, %17, %cst_15 {dimension_numbers = #tpu.dot_dimension_numbers<[1], [0], [0], [1], [0, 0, 1, 1], [], []>} : vector<8x128xbf16>, vector<128x512xbf16>, vector<8x512xf32> -> vector<8x512xf32>
    %19 = arith.truncf %15 : vector<8x128xf32> to vector<8x128xbf16>
    %c0_16 = arith.constant 0 : index
    %c0_17 = arith.constant 0 : index
    %20 = vector.load %arg7[%c0_16, %c0_17] : memref<128x512xbf16, #tpu.memory_space<vmem>>, vector<128x512xbf16>
    %cst_18 = arith.constant dense<0.000000e+00> : vector<8x512xf32>
    %21 = tpu.matmul %19, %20, %cst_18 {dimension_numbers = #tpu.dot_dimension_numbers<[1], [0], [0], [1], [0, 0, 1, 1], [], []>} : vector<8x128xbf16>, vector<128x512xbf16>, vector<8x512xf32> -> vector<8x512xf32>
    %22 = arith.addf %18, %21 : vector<8x512xf32>
    %c0_19 = arith.constant 0 : index
    %c0_20 = arith.constant 0 : index
    %23 = vector.load %arg8[%c0_19, %c0_20] : memref<1x512xf32, #tpu.memory_space<vmem>>, vector<1x512xf32>
    %24 = vector.broadcast %23 : vector<1x512xf32> to vector<8x512xf32>
    %25 = arith.addf %22, %24 : vector<8x512xf32>
    %26 = arith.mulf %25, %25 : vector<8x512xf32>
    %cst_21 = arith.constant dense<0.000000e+00> : vector<8xf32>
    %27 = vector.multi_reduction <add>, %26, %cst_21 [1] : vector<8x512xf32> to vector<8xf32>
    %28 = vector.shape_cast %27 : vector<8xf32> to vector<8x1xf32>
    %cst_22 = arith.constant 1.000000e-24 : f32
    %29 = vector.broadcast %cst_22 : f32 to vector<8x1xf32>
    %30 = arith.maximumf %28, %29 : vector<8x1xf32>
    %31 = math.rsqrt %30 : vector<8x1xf32>
    %32 = vector.broadcast %31 : vector<8x1xf32> to vector<8x512xf32>
    %33 = arith.mulf %25, %32 : vector<8x512xf32>
    %c0_23 = arith.constant 0 : index
    %c0_24 = arith.constant 0 : index
    %34 = vector.load %arg9[%c0_23, %c0_24] : memref<8x512xf32, #tpu.memory_space<vmem>>, vector<8x512xf32>
    tpu.vector_store %arg9[%c0_23, %c0_24], %33 {strides = array<i32>} : memref<8x512xf32, #tpu.memory_space<vmem>>, vector<8x512xf32>,
    return
  }
  func.func @transform_0(%arg0: i32) -> (i32, i32, i32) {
    %c0_i32 = arith.constant 0 : i32
    %c0_i32_0 = arith.constant 0 : i32
    %c0_i32_1 = arith.constant 0 : i32
    return %arg0, %c0_i32, %c0_i32_0 : i32, i32, i32
  }
  func.func @transform_1(%arg0: i32) -> (i32, i32, i32) {
    %c0_i32 = arith.constant 0 : i32
    %c0_i32_0 = arith.constant 0 : i32
    %c0_i32_1 = arith.constant 0 : i32
    return %arg0, %c0_i32, %c0_i32_0 : i32, i32, i32
  }
  func.func @transform_2(%arg0: i32) -> (i32, i32) {
    %c0_i32 = arith.constant 0 : i32
    %c0_i32_0 = arith.constant 0 : i32
    return %arg0, %c0_i32 : i32, i32
  }
  func.func @transform_3(%arg0: i32) -> (i32, i32) {
    %c0_i32 = arith.constant 0 : i32
    %c0_i32_0 = arith.constant 0 : i32
    %c0_i32_1 = arith.constant 0 : i32
    return %c0_i32, %c0_i32_0 : i32, i32
  }
  func.func @transform_4(%arg0: i32) -> (i32, i32) {
    %c0_i32 = arith.constant 0 : i32
    %c0_i32_0 = arith.constant 0 : i32
    %c0_i32_1 = arith.constant 0 : i32
    return %c0_i32, %c0_i32_0 : i32, i32
  }
  func.func @transform_5(%arg0: i32) -> (i32, i32) {
    %c0_i32 = arith.constant 0 : i32
    %c0_i32_0 = arith.constant 0 : i32
    %c0_i32_1 = arith.constant 0 : i32
    return %c0_i32, %c0_i32_0 : i32, i32
  }
  func.func @transform_6(%arg0: i32) -> (i32, i32) {
    %c0_i32 = arith.constant 0 : i32
    %c0_i32_0 = arith.constant 0 : i32
    %c0_i32_1 = arith.constant 0 : i32
    return %c0_i32, %c0_i32_0 : i32, i32
  }
  func.func @transform_7(%arg0: i32) -> (i32, i32) {
    %c0_i32 = arith.constant 0 : i32
    %c0_i32_0 = arith.constant 0 : i32
    %c0_i32_1 = arith.constant 0 : i32
    return %c0_i32, %c0_i32_0 : i32, i32
  }
  func.func @transform_8(%arg0: i32) -> (i32, i32) {
    %c0_i32 = arith.constant 0 : i32
    %c0_i32_0 = arith.constant 0 : i32
    return %arg0, %c0_i32 : i32, i32
  }
}

</mosaic_0001>

<llo_original>
// kernel: tpu_custom_call.1
$region0: #{tpu_custom_call.1}
  #allocation0 [shape = 'u32[]', space=smem, size = 0x4, offset = 0x4, fixed_abs, tag = 'smem constant byte address 0x4 - core index']
  #allocation1 [shape = 'u32[144,128]{1,0:T(1,128)}', space=vmem, size = 0x12000, scoped, tag = 'internal scratch']
  %s0 = inlined_call_operand.hbm [shape: bf16[16,64,128], index: 0, kind: input, shape index: {}]
  %s1 = inlined_call_operand.hbm [shape: bf16[16,8,128], index: 1, kind: input, shape index: {}]
  %s2 = inlined_call_operand.vmem [shape: f32[16,8], index: 2, kind: input, shape index: {}]
  %s3 = inlined_call_operand.hbm [shape: bf16[128,128], index: 3, kind: input, shape index: {}]
  %s4 = inlined_call_operand.vmem [shape: f32[1,128], index: 4, kind: input, shape index: {}]
  %s5 = inlined_call_operand.hbm [shape: bf16[128,512], index: 5, kind: input, shape index: {}]
  %s6 = inlined_call_operand.hbm [shape: bf16[128,512], index: 6, kind: input, shape index: {}]
  %s7 = inlined_call_operand.vmem [shape: f32[1,512], index: 7, kind: input, shape index: {}]
  %s8 = inlined_call_operand.hbm [shape: f32[16,512], index: 8, kind: output, shape index: {}]
  %s9 = sld [smem:[#allocation0]]
  $region85: #{tpu_custom_call.1} parent=0
    _
  %s11 = ssub.s32 1, %s9
  %s12 = scalar_select 0, %s11, %s9
  $region1: #{tpu_custom_call.1} parent=0
    #allocation2 [shape = 'u8[262144]{0}', space=vmem, size = 0x40000, scoped, tag = 'input window, operand 0']
    #allocation3 [shape = 's32[2]{0}', space=sflag, size = 0x8, scoped, tag = 'scoped memory for tpu_custom_call.1']
    #allocation4 [shape = 's32[2]{0}', space=sflag, size = 0x8, scoped, tag = 'scoped memory for tpu_custom_call.1']
    #allocation5 [shape = 'u8[32768]{0}', space=vmem, size = 0x8000, scoped, tag = 'input window, operand 1']
    #allocation6 [shape = 's32[2]{0}', space=sflag, size = 0x8, scoped, tag = 'scoped memory for tpu_custom_call.1']
    #allocation7 [shape = 'u8[32768]{0}', space=vmem, size = 0x8000, scoped, tag = 'input window, operand 3, single buffered']
    #allocation8 [shape = 'u8[131072]{0}', space=vmem, size = 0x20000, scoped, tag = 'input window, operand 5, single buffered']
    #allocation9 [shape = 's32[1]{0}', space=sflag, size = 0x4, scoped, tag = 'scoped memory for tpu_custom_call.1']
    #allocation10 [shape = 'u8[131072]{0}', space=vmem, size = 0x20000, scoped, tag = 'input window, operand 6, single buffered']
    #allocation11 [shape = 'u8[32768]{0}', space=vmem, size = 0x8000, scoped, tag = 'output window, operand 0']
    %13 = vsyncpa [#allocation3], 0
    %s14 = scalar_lea.sflag [#allocation3], 1
    %15 = vsyncpa %s14, 0
    %16 = vsyncpa [#allocation6], 0
    %s17 = scalar_lea.sflag [#allocation6], 1
    %18 = vsyncpa %s17, 0
    %19 = vsyncpa [#allocation9], 0
    %20 = vsyncpa [#allocation4], 0
    %s21 = scalar_lea.sflag [#allocation4], 1
    %22 = vsyncpa %s21, 0
    loop: start=0, step=1, limit=4
    $region2: #{tpu_custom_call.1} parent=1 // loop_pre_header
      _
    $region3: #{tpu_custom_call.1} parent=1 // loop_header
      %s24 = sphi 0, %s28
      %p25 = scmp.ge.s32.totalorder %s24, 4
      %s34 = sphi 0, %s36
      %s37 = sphi 0, %s34
      %s38 = sphi 0, %s37
      %s54 = sphi 0, %s38
      %s60 = sphi 0, %s62
      %s63 = sphi 0, %s60
      %s64 = sphi 0, %s63
      %s80 = sphi 0, %s64
      %s86 = sphi 0, %s88
      %s89 = sphi 0, %s86
      %s90 = sphi 0, %s89
      %s106 = sphi 0, %s90
      %s110 = sphi 0, %s110
      %s112 = sphi 0, %s110
      %s113 = sphi 0, %s112
      %s127 = sphi 0, %s113
      %s131 = sphi 0, %s131
      %s133 = sphi 0, %s131
      %s134 = sphi 0, %s133
      %s148 = sphi 0, %s134
      %s152 = sphi 0, %s152
      %s154 = sphi 0, %s152
      %s155 = sphi 0, %s154
      %s169 = sphi 0, %s155
      %s173 = sphi 0, %s173
      %s175 = sphi 0, %s173
      %s176 = sphi 0, %s175
      %s190 = sphi 0, %s176
      %s194 = sphi 0, %s194
      %s196 = sphi 0, %s194
      %s197 = sphi 0, %s196
      %s211 = sphi 0, %s197
      %s217 = sphi 0, %s219
      %s220 = sphi 0, %s217
      %s221 = sphi 0, %s220
      %s237 = sphi 0, %s221
    $region4: #{tpu_custom_call.1} parent=1 // loop_header_branch
      %27 = sbr.rel (%p25) target = $region8
    $region5: #{tpu_custom_call.1} parent=1 // loop_body
      %s29 = ssub.s32 %s24, 1
      %s30 = ssub.s32 %s24, 2
      %s31 = sadd.s32 %s24, 1
      %s32 = ssub.s32 %s24, %s31
      %p33 = scmp.eq.s32.totalorder %s32, 0
      %s35 = sadd.s32 %s34, 1
      %s36 = scalar_select %p33, %s34, %s35
      %p39 = pneg %p33
      %p40 = scmp.eq.s32.totalorder %s24, 1
      %p41 = por %p39, %p40
      %p42 = scmp.ne.s32.totalorder %s34, %s37
      %p43 = scmp.eq.s32.totalorder %s24, 0
      %p44 = por %p42, %p43
      %p45 = scmp.ne.s32.totalorder %s34, %s37
      %p46 = scmp.eq.s32.totalorder %s29, 1
      %p47 = por %p45, %p46
      %p48 = scmp.ne.s32.totalorder %s37, %s38
      %p49 = scmp.eq.s32.totalorder %s29, 0
      %p50 = por %p48, %p49
      %p51 = scmp.ne.s32.totalorder %s37, %s38
      %p52 = scmp.eq.s32.totalorder %s30, 1
      %p53 = por %p51, %p52
      %p55 = scmp.ne.s32.totalorder %s38, %s54
      %p56 = scmp.eq.s32.totalorder %s30, 0
      %p57 = por %p55, %p56
      %s58 = ssub.s32 %s24, %s31
      %p59 = scmp.eq.s32.totalorder %s58, 0
      %s61 = sadd.s32 %s60, 1
      %s62 = scalar_select %p59, %s60, %s61
      %p65 = pneg %p59
      %p66 = scmp.eq.s32.totalorder %s24, 1
      %p67 = por %p65, %p66
      %p68 = scmp.ne.s32.totalorder %s60, %s63
      %p69 = scmp.eq.s32.totalorder %s24, 0
      %p70 = por %p68, %p69
      %p71 = scmp.ne.s32.totalorder %s60, %s63
      %p72 = scmp.eq.s32.totalorder %s29, 1
      %p73 = por %p71, %p72
      %p74 = scmp.ne.s32.totalorder %s63, %s64
      %p75 = scmp.eq.s32.totalorder %s29, 0
      %p76 = por %p74, %p75
      %p77 = scmp.ne.s32.totalorder %s63, %s64
      %p78 = scmp.eq.s32.totalorder %s30, 1
      %p79 = por %p77, %p78
      %p81 = scmp.ne.s32.totalorder %s64, %s80
      %p82 = scmp.eq.s32.totalorder %s30, 0
      %p83 = por %p81, %p82
      %s84 = ssub.s32 %s24, %s31
      %p85 = scmp.eq.s32.totalorder %s84, 0
      %s87 = sadd.s32 %s86, 1
      %s88 = scalar_select %p85, %s86, %s87
      %p91 = pneg %p85
      %p92 = scmp.eq.s32.totalorder %s24, 1
      %p93 = por %p91, %p92
      %p94 = scmp.ne.s32.totalorder %s86, %s89
      %p95 = scmp.eq.s32.totalorder %s24, 0
      %p96 = por %p94, %p95
      %p97 = scmp.ne.s32.totalorder %s86, %s89
      %p98 = scmp.eq.s32.totalorder %s29, 1
      %p99 = por %p97, %p98
      %p100 = scmp.ne.s32.totalorder %s89, %s90
      %p101 = scmp.eq.s32.totalorder %s29, 0
      %p102 = por %p100, %p101
      %p103 = scmp.ne.s32.totalorder %s89, %s90
      %p104 = scmp.eq.s32.totalorder %s30, 1
      %p105 = por %p103, %p104
      %p107 = scmp.ne.s32.totalorder %s90, %s106
      %p108 = scmp.eq.s32.totalorder %s30, 0
      %p109 = por %p107, %p108
      %s111 = sadd.s32 %s110, 1
      %p114 = scmp.eq.s32.totalorder %s24, 1
      %p115 = scmp.ne.s32.totalorder %s110, %s112
      %p116 = scmp.eq.s32.totalorder %s24, 0
      %p117 = por %p115, %p116
      %p118 = scmp.ne.s32.totalorder %s110, %s112
      %p119 = scmp.eq.s32.totalorder %s29, 1
      %p120 = por %p118, %p119
      %p121 = scmp.ne.s32.totalorder %s112, %s113
      %p122 = scmp.eq.s32.totalorder %s29, 0
      %p123 = por %p121, %p122
      %p124 = scmp.ne.s32.totalorder %s112, %s113
      %p125 = scmp.eq.s32.totalorder %s30, 1
      %p126 = por %p124, %p125
      %p128 = scmp.ne.s32.totalorder %s113, %s127
      %p129 = scmp.eq.s32.totalorder %s30, 0
      %p130 = por %p128, %p129
      %s132 = sadd.s32 %s131, 1
      %p135 = scmp.eq.s32.totalorder %s24, 1
      %p136 = scmp.ne.s32.totalorder %s131, %s133
      %p137 = scmp.eq.s32.totalorder %s24, 0
      %p138 = por %p136, %p137
      %p139 = scmp.ne.s32.totalorder %s131, %s133
      %p140 = scmp.eq.s32.totalorder %s29, 1
      %p141 = por %p139, %p140
      %p142 = scmp.ne.s32.totalorder %s133, %s134
      %p143 = scmp.eq.s32.totalorder %s29, 0
      %p144 = por %p142, %p143
      %p145 = scmp.ne.s32.totalorder %s133, %s134
      %p146 = scmp.eq.s32.totalorder %s30, 1
      %p147 = por %p145, %p146
      %p149 = scmp.ne.s32.totalorder %s134, %s148
      %p150 = scmp.eq.s32.totalorder %s30, 0
      %p151 = por %p149, %p150
      %s153 = sadd.s32 %s152, 1
      %p156 = scmp.eq.s32.totalorder %s24, 1
      %p157 = scmp.ne.s32.totalorder %s152, %s154
      %p158 = scmp.eq.s32.totalorder %s24, 0
      %p159 = por %p157, %p158
      %p160 = scmp.ne.s32.totalorder %s152, %s154
      %p161 = scmp.eq.s32.totalorder %s29, 1
      %p162 = por %p160, %p161
      %p163 = scmp.ne.s32.totalorder %s154, %s155
      %p164 = scmp.eq.s32.totalorder %s29, 0
      %p165 = por %p163, %p164
      %p166 = scmp.ne.s32.totalorder %s154, %s155
      %p167 = scmp.eq.s32.totalorder %s30, 1
      %p168 = por %p166, %p167
      %p170 = scmp.ne.s32.totalorder %s155, %s169
      %p171 = scmp.eq.s32.totalorder %s30, 0
      %p172 = por %p170, %p171
      %s174 = sadd.s32 %s173, 1
      %p177 = scmp.eq.s32.totalorder %s24, 1
      %p178 = scmp.ne.s32.totalorder %s173, %s175
      %p179 = scmp.eq.s32.totalorder %s24, 0
      %p180 = por %p178, %p179
      %p181 = scmp.ne.s32.totalorder %s173, %s175
      %p182 = scmp.eq.s32.totalorder %s29, 1
      %p183 = por %p181, %p182
      %p184 = scmp.ne.s32.totalorder %s175, %s176
      %p185 = scmp.eq.s32.totalorder %s29, 0
      %p186 = por %p184, %p185
      %p187 = scmp.ne.s32.totalorder %s175, %s176
      %p188 = scmp.eq.s32.totalorder %s30, 1
      %p189 = por %p187, %p188
      %p191 = scmp.ne.s32.totalorder %s176, %s190
      %p192 = scmp.eq.s32.totalorder %s30, 0
      %p193 = por %p191, %p192
      %s195 = sadd.s32 %s194, 1
      %p198 = scmp.eq.s32.totalorder %s24, 1
      %p199 = scmp.ne.s32.totalorder %s194, %s196
      %p200 = scmp.eq.s32.totalorder %s24, 0
      %p201 = por %p199, %p200
      %p202 = scmp.ne.s32.totalorder %s194, %s196
      %p203 = scmp.eq.s32.totalorder %s29, 1
      %p204 = por %p202, %p203
      %p205 = scmp.ne.s32.totalorder %s196, %s197
      %p206 = scmp.eq.s32.totalorder %s29, 0
      %p207 = por %p205, %p206
      %p208 = scmp.ne.s32.totalorder %s196, %s197
      %p209 = scmp.eq.s32.totalorder %s30, 1
      %p210 = por %p208, %p209
      %p212 = scmp.ne.s32.totalorder %s197, %s211
      %p213 = scmp.eq.s32.totalorder %s30, 0
      %p214 = por %p212, %p213
      %s215 = ssub.s32 %s24, %s31
      %p216 = scmp.eq.s32.totalorder %s215, 0
      %s218 = sadd.s32 %s217, 1
      %s219 = scalar_select %p216, %s217, %s218
      %p222 = pneg %p216
      %p223 = scmp.eq.s32.totalorder %s24, 1
      %p224 = por %p222, %p223
      %p225 = scmp.ne.s32.totalorder %s217, %s220
      %p226 = scmp.eq.s32.totalorder %s24, 0
      %p227 = por %p225, %p226
      %p228 = scmp.ne.s32.totalorder %s217, %s220
      %p229 = scmp.eq.s32.totalorder %s29, 1
      %p230 = por %p228, %p229
      %p231 = scmp.ne.s32.totalorder %s220, %s221
      %p232 = scmp.eq.s32.totalorder %s29, 0
      %p233 = por %p231, %p232
      %p234 = scmp.ne.s32.totalorder %s220, %s221
      %p235 = scmp.eq.s32.totalorder %s30, 1
      %p236 = por %p234, %p235
      %p238 = scmp.ne.s32.totalorder %s221, %s237
      %p239 = scmp.eq.s32.totalorder %s30, 0
      %p240 = por %p238, %p239
      %p241 = scmp.le.s32.totalorder 1, %s24
      %p242 = scmp.lt.s32.totalorder %s24, 3
      %p243 = pnand %p241, %p242
      %p244 = pneg %p243
      // Predicated region
      $region9: #{tpu_custom_call.1} parent=5 // pred_check
        _
      $region10: #{tpu_custom_call.1} parent=5 // pred_check_branch
        %246 = sbr.rel (%p243) target = $region12
      $region11: #{tpu_custom_call.1} parent=5 // pred_region
        %s247 = ssub.s32 %s24, 1
        // Predicated region
        $region13: #{tpu_custom_call.1} parent=11 // pred_check
          %p248 = pneg %p123
        $region14: #{tpu_custom_call.1} parent=11 // pred_check_branch
          %250 = sbr.rel (%p248) target = $region16
        $region15: #{tpu_custom_call.1} parent=11 // pred_region
          %s252 = ssub.s32 1024, 1024
          %253 = vsyncadd [#allocation6], %s252
          %s254 = sshll.u32 [#allocation7], 4
          %s255 = int_to_ptr.vmem [resolvable:$true] %s254
          %260 = dma.hbm_to_vmem [thread:$0]  %s3, 1024, %s255, [#allocation6], 64, 64, 4
        $region16: #{tpu_custom_call.1} parent=11 // pred_fallthru
          _
        // Predicated region
        $region17: #{tpu_custom_call.1} parent=11 // pred_check
          %p261 = pneg %p144
        $region18: #{tpu_custom_call.1} parent=11 // pred_check_branch
          %263 = sbr.rel (%p261) target = $region20
        $region19: #{tpu_custom_call.1} parent=11 // pred_region
          _
        $region20: #{tpu_custom_call.1} parent=11 // pred_fallthru
          _
        // Predicated region
        $region21: #{tpu_custom_call.1} parent=11 // pred_check
          %p264 = pneg %p165
        $region22: #{tpu_custom_call.1} parent=11 // pred_check_branch
          %266 = sbr.rel (%p264) target = $region24
        $region23: #{tpu_custom_call.1} parent=11 // pred_region
          %s268 = ssub.s32 4096, 4096
          %269 = vsyncadd [#allocation9], %s268
          %s270 = sshll.u32 [#allocation8], 4
          %s271 = int_to_ptr.vmem [resolvable:$true] %s270
          %276 = dma.hbm_to_vmem [thread:$0]  %s5, 4096, %s271, [#allocation9], 256, 256, 16
        $region24: #{tpu_custom_call.1} parent=11 // pred_fallthru
          _
        // Predicated region
        $region25: #{tpu_custom_call.1} parent=11 // pred_check
          %p277 = pneg %p186
        $region26: #{tpu_custom_call.1} parent=11 // pred_check_branch
          %279 = sbr.rel (%p277) target = $region28
        $region27: #{tpu_custom_call.1} parent=11 // pred_region
          %s281 = ssub.s32 4096, 4096
          %282 = vsyncadd [#allocation9], %s281
          %s283 = sshll.u32 [#allocation10], 4
          %s284 = int_to_ptr.vmem [resolvable:$true] %s283
          %289 = dma.hbm_to_vmem [thread:$0]  %s6, 4096, %s284, [#allocation9], 256, 256, 16
        $region28: #{tpu_custom_call.1} parent=11 // pred_fallthru
          _
        // Predicated region
        $region29: #{tpu_custom_call.1} parent=11 // pred_check
          %p290 = pneg %p207
        $region30: #{tpu_custom_call.1} parent=11 // pred_check_branch
          %292 = sbr.rel (%p290) target = $region32
        $region31: #{tpu_custom_call.1} parent=11 // pred_region
          _
        $region32: #{tpu_custom_call.1} parent=11 // pred_fallthru
          _
      $region12: #{tpu_custom_call.1} parent=5 // pred_fallthru
        _
      %p293 = scmp.lt.s32.totalorder %s24, 2
      // Predicated region
      $region33: #{tpu_custom_call.1} parent=5 // pred_check
        %p294 = pneg %p293
      $region34: #{tpu_custom_call.1} parent=5 // pred_check_branch
        %296 = sbr.rel (%p294) target = $region36
      $region35: #{tpu_custom_call.1} parent=5 // pred_region
        // Predicated region
        $region37: #{tpu_custom_call.1} parent=35 // pred_check
          %p297 = pneg %p44
        $region38: #{tpu_custom_call.1} parent=35 // pred_check_branch
          %299 = sbr.rel (%p297) target = $region40
        $region39: #{tpu_custom_call.1} parent=35 // pred_region
          %s300 = sand.u32 %s34, 1
          %s301 = scalar_lea.sflag [#allocation3], %s300
          %s302 = sand.u32 %s34, 1
          %s303 = smul.addr %s302, 256
          %s304 = scalar_lea.vmem [#allocation2], %s303
          %s305 = smul.u32 8, %s24
          %s307 = ssub.s32 4096, 4096
          %308 = vsyncadd %s301, %s307
          %s309 = smul.addr %s305, 8
          %s310 = smul.addr %s309, 64
          %s311 = scalar_lea.hbm %s0, %s310
          %s312 = sshll.u32 %s304, 4
          %s313 = int_to_ptr.vmem [resolvable:$true] %s312
          %318 = dma.hbm_to_vmem [thread:$0]  %s311, 4096, %s313, %s301, 64, 64, 4
        $region40: #{tpu_custom_call.1} parent=35 // pred_fallthru
          _
        // Predicated region
        $region41: #{tpu_custom_call.1} parent=35 // pred_check
          %p319 = pneg %p70
        $region42: #{tpu_custom_call.1} parent=35 // pred_check_branch
          %321 = sbr.rel (%p319) target = $region44
        $region43: #{tpu_custom_call.1} parent=35 // pred_region
          %s322 = sand.u32 %s24, 1
          %s323 = scalar_lea.sflag [#allocation6], %s322
          %s324 = sand.u32 %s60, 1
          %s325 = smul.addr %s324, 32
          %s326 = scalar_lea.vmem [#allocation5], %s325
          %s327 = smul.u32 8, %s24
          %s329 = ssub.s32 512, 512
          %330 = vsyncadd %s323, %s329
          %s331 = smul.addr %s327, 64
          %s332 = scalar_lea.hbm %s1, %s331
          %s333 = sshll.u32 %s326, 4
          %s334 = int_to_ptr.vmem [resolvable:$true] %s333
          %339 = dma.hbm_to_vmem [thread:$0]  %s332, 512, %s334, %s323, 64, 64, 4
        $region44: #{tpu_custom_call.1} parent=35 // pred_fallthru
          _
        // Predicated region
        $region45: #{tpu_custom_call.1} parent=35 // pred_check
          %p340 = pneg %p96
        $region46: #{tpu_custom_call.1} parent=35 // pred_check_branch
          %342 = sbr.rel (%p340) target = $region48
        $region47: #{tpu_custom_call.1} parent=35 // pred_region
          %p343 = scmp.lt.s32.totalorder %s24, 1
          %s344 = scalar_select %p343, %s24, 1
          %s345 = smul.addr %s344, 8
          %s346 = scalar_lea.vmem %s2, %s345
        $region48: #{tpu_custom_call.1} parent=35 // pred_fallthru
          _
      $region36: #{tpu_custom_call.1} parent=5 // pred_fallthru
        _
      %p347 = scmp.le.s32.totalorder 1, %s24
      %p348 = scmp.lt.s32.totalorder %s24, 3
      %p349 = pnand %p347, %p348
      %p350 = pneg %p349
      // Predicated region
      $region49: #{tpu_custom_call.1} parent=5 // pred_check
        _
      $region50: #{tpu_custom_call.1} parent=5 // pred_check_branch
        %352 = sbr.rel (%p349) target = $region52
      $region51: #{tpu_custom_call.1} parent=5 // pred_region
        %s353 = ssub.s32 %s24, 1
        %s354 = sand.u32 %s37, 1
        %s355 = scalar_lea.sflag [#allocation3], %s354
        %s356 = sand.u32 %s37, 1
        %s357 = smul.addr %s356, 256
        %s358 = scalar_lea.vmem [#allocation2], %s357
        // Predicated region
        $region53: #{tpu_custom_call.1} parent=51 // pred_check
          %p359 = pneg %p50
        $region54: #{tpu_custom_call.1} parent=51 // pred_check_branch
          %361 = sbr.rel (%p359) target = $region56
        $region55: #{tpu_custom_call.1} parent=51 // pred_region
          %362 = dma.done %s355, 4096
        $region56: #{tpu_custom_call.1} parent=51 // pred_fallthru
          _
        %s363 = sand.u32 %s29, 1
        %s364 = scalar_lea.sflag [#allocation6], %s363
        %s365 = sand.u32 %s63, 1
        %s366 = smul.addr %s365, 32
        %s367 = scalar_lea.vmem [#allocation5], %s366
        // Predicated region
        $region57: #{tpu_custom_call.1} parent=51 // pred_check
          %p368 = pneg %p76
        $region58: #{tpu_custom_call.1} parent=51 // pred_check_branch
          %370 = sbr.rel (%p368) target = $region60
        $region59: #{tpu_custom_call.1} parent=51 // pred_region
          %371 = dma.done %s364, 512
        $region60: #{tpu_custom_call.1} parent=51 // pred_fallthru
          _
        // Predicated region
        $region61: #{tpu_custom_call.1} parent=51 // pred_check
          %p372 = pneg %p123
        $region62: #{tpu_custom_call.1} parent=51 // pred_check_branch
          %374 = sbr.rel (%p372) target = $region64
        $region63: #{tpu_custom_call.1} parent=51 // pred_region
          %375 = dma.done [#allocation6], 1024
        $region64: #{tpu_custom_call.1} parent=51 // pred_fallthru
          _
        // Predicated region
        $region65: #{tpu_custom_call.1} parent=51 // pred_check
          %p376 = pneg %p165
        $region66: #{tpu_custom_call.1} parent=51 // pred_check_branch
          %378 = sbr.rel (%p376) target = $region68
        $region67: #{tpu_custom_call.1} parent=51 // pred_region
          %379 = dma.done [#allocation9], 4096
        $region68: #{tpu_custom_call.1} parent=51 // pred_fallthru
          _
        // Predicated region
        $region69: #{tpu_custom_call.1} parent=51 // pred_check
          %p380 = pneg %p186
        $region70: #{tpu_custom_call.1} parent=51 // pred_check_branch
          %382 = sbr.rel (%p380) target = $region72
        $region71: #{tpu_custom_call.1} parent=51 // pred_region
          %383 = dma.done [#allocation9], 4096
        $region72: #{tpu_custom_call.1} parent=51 // pred_fallthru
          _
        %s384 = sand.u32 %s37, 1
        %s385 = scalar_lea.sflag [#allocation3], %s384
        %s386 = sand.u32 %s37, 1
        %s387 = smul.addr %s386, 256
        %s388 = scalar_lea.vmem [#allocation2], %s387
        %p389 = pneg %p50
        %p390 = pneg %p47
        %s391 = sand.u32 %s29, 1
        %s392 = scalar_lea.sflag [#allocation6], %s391
        %s393 = sand.u32 %s63, 1
        %s394 = smul.addr %s393, 32
        %s395 = scalar_lea.vmem [#allocation5], %s394
        %p396 = pneg %p76
        %p397 = pneg %p73
        %p398 = scmp.lt.s32.totalorder %s29, 1
        %s399 = scalar_select %p398, %s29, 1
        %s400 = smul.addr %s399, 8
        %s401 = scalar_lea.vmem %s2, %s400
        %p402 = pneg %p102
        %p403 = pneg %p99
        %p404 = pneg %p123
        %p405 = pneg %p120
        %p406 = pneg %p144
        %p407 = pneg %p141
        %p408 = pneg %p165
        %p409 = pneg %p162
        %p410 = pneg %p186
        %p411 = pneg %p183
        %p412 = pneg %p207
        %p413 = pneg %p204
        %p414 = pneg %p233
        %p415 = pneg %p230
        %s416 = sand.u32 %s220, 1
        %s417 = scalar_lea.sflag [#allocation4], %s416
        %s418 = sand.u32 %s220, 1
        %s419 = smul.addr %s418, 32
        %s420 = scalar_lea.vmem [#allocation11], %s419
        %s421 = smul.u32 8, %s29
        %s422 = smul.u32 8, %s29
        %p423 = scmp.lt.s32.totalorder %s29, 1
        %s424 = scalar_select %p423, %s29, 1
        %s425 = smul.addr %s424, 8
        %s426 = scalar_lea.vmem %s2, %s425
        %v428 = vld [vmem:[%s358] sm:$0xf]
        %v429 = vld [vmem:[%s358 + $0x4] sm:$0xf]
        %v430 = vld [vmem:[%s358 + $0x8] sm:$0xf]
        %v431 = vld [vmem:[%s358 + $0xc] sm:$0xf]
        %v432 = vld [vmem:[%s358 + $0x10] sm:$0xf]
        %v433 = vld [vmem:[%s358 + $0x14] sm:$0xf]
        %v434 = vld [vmem:[%s358 + $0x18] sm:$0xf]
        %v435 = vld [vmem:[%s358 + $0x1c] sm:$0xf]
        %v436 = vld [vmem:[%s358 + $0x20] sm:$0xf]
        %v437 = vld [vmem:[%s358 + $0x24] sm:$0xf]
        %v438 = vld [vmem:[%s358 + $0x28] sm:$0xf]
        %v439 = vld [vmem:[%s358 + $0x2c] sm:$0xf]
        %v440 = vld [vmem:[%s358 + $0x30] sm:$0xf]
        %v441 = vld [vmem:[%s358 + $0x34] sm:$0xf]
        %v442 = vld [vmem:[%s358 + $0x38] sm:$0xf]
        %v443 = vld [vmem:[%s358 + $0x3c] sm:$0xf]
        %v444 = vld [vmem:[%s358 + $0x40] sm:$0xf]
        %v445 = vld [vmem:[%s358 + $0x44] sm:$0xf]
        %v446 = vld [vmem:[%s358 + $0x48] sm:$0xf]
        %v447 = vld [vmem:[%s358 + $0x4c] sm:$0xf]
        %v448 = vld [vmem:[%s358 + $0x50] sm:$0xf]
        %v449 = vld [vmem:[%s358 + $0x54] sm:$0xf]
        %v450 = vld [vmem:[%s358 + $0x58] sm:$0xf]
        %v451 = vld [vmem:[%s358 + $0x5c] sm:$0xf]
        %v452 = vld [vmem:[%s358 + $0x60] sm:$0xf]
        %v453 = vld [vmem:[%s358 + $0x64] sm:$0xf]
        %v454 = vld [vmem:[%s358 + $0x68] sm:$0xf]
        %v455 = vld [vmem:[%s358 + $0x6c] sm:$0xf]
        %v456 = vld [vmem:[%s358 + $0x70] sm:$0xf]
        %v457 = vld [vmem:[%s358 + $0x74] sm:$0xf]
        %v458 = vld [vmem:[%s358 + $0x78] sm:$0xf]
        %v459 = vld [vmem:[%s358 + $0x7c] sm:$0xf]
        %v460 = vld [vmem:[%s358 + $0x80] sm:$0xf]
        %v461 = vld [vmem:[%s358 + $0x84] sm:$0xf]
        %v462 = vld [vmem:[%s358 + $0x88] sm:$0xf]
        %v463 = vld [vmem:[%s358 + $0x8c] sm:$0xf]
        %v464 = vld [vmem:[%s358 + $0x90] sm:$0xf]
        %v465 = vld [vmem:[%s358 + $0x94] sm:$0xf]
        %v466 = vld [vmem:[%s358 + $0x98] sm:$0xf]
        %v467 = vld [vmem:[%s358 + $0x9c] sm:$0xf]
        %v468 = vld [vmem:[%s358 + $0xa0] sm:$0xf]
        %v469 = vld [vmem:[%s358 + $0xa4] sm:$0xf]
        %v470 = vld [vmem:[%s358 + $0xa8] sm:$0xf]
        %v471 = vld [vmem:[%s358 + $0xac] sm:$0xf]
        %v472 = vld [vmem:[%s358 + $0xb0] sm:$0xf]
        %v473 = vld [vmem:[%s358 + $0xb4] sm:$0xf]
        %v474 = vld [vmem:[%s358 + $0xb8] sm:$0xf]
        %v475 = vld [vmem:[%s358 + $0xbc] sm:$0xf]
        %v476 = vld [vmem:[%s358 + $0xc0] sm:$0xf]
        %v477 = vld [vmem:[%s358 + $0xc4] sm:$0xf]
        %v478 = vld [vmem:[%s358 + $0xc8] sm:$0xf]
        %v479 = vld [vmem:[%s358 + $0xcc] sm:$0xf]
        %v480 = vld [vmem:[%s358 + $0xd0] sm:$0xf]
        %v481 = vld [vmem:[%s358 + $0xd4] sm:$0xf]
        %v482 = vld [vmem:[%s358 + $0xd8] sm:$0xf]
        %v483 = vld [vmem:[%s358 + $0xdc] sm:$0xf]
        %v484 = vld [vmem:[%s358 + $0xe0] sm:$0xf]
        %v485 = vld [vmem:[%s358 + $0xe4] sm:$0xf]
        %v486 = vld [vmem:[%s358 + $0xe8] sm:$0xf]
        %v487 = vld [vmem:[%s358 + $0xec] sm:$0xf]
        %v488 = vld [vmem:[%s358 + $0xf0] sm:$0xf]
        %v489 = vld [vmem:[%s358 + $0xf4] sm:$0xf]
        %v490 = vld [vmem:[%s358 + $0xf8] sm:$0xf]
        %v491 = vld [vmem:[%s358 + $0xfc] sm:$0xf]
        %v492 = vunpack.c.l.bf16 %v428
        %v493 = vunpack.c.l.bf16 %v429
        %v494 = vunpack.c.l.bf16 %v430
        %v495 = vunpack.c.l.bf16 %v431
        %v496 = vunpack.c.l.bf16 %v432
        %v497 = vunpack.c.l.bf16 %v433
        %v498 = vunpack.c.l.bf16 %v434
        %v499 = vunpack.c.l.bf16 %v435
        %v500 = vunpack.c.l.bf16 %v436
        %v501 = vunpack.c.l.bf16 %v437
        %v502 = vunpack.c.l.bf16 %v438
        %v503 = vunpack.c.l.bf16 %v439
        %v504 = vunpack.c.l.bf16 %v440
        %v505 = vunpack.c.l.bf16 %v441
        %v506 = vunpack.c.l.bf16 %v442
        %v507 = vunpack.c.l.bf16 %v443
        %v508 = vunpack.c.l.bf16 %v444
        %v509 = vunpack.c.l.bf16 %v445
        %v510 = vunpack.c.l.bf16 %v446
        %v511 = vunpack.c.l.bf16 %v447
        %v512 = vunpack.c.l.bf16 %v448
        %v513 = vunpack.c.l.bf16 %v449
        %v514 = vunpack.c.l.bf16 %v450
        %v515 = vunpack.c.l.bf16 %v451
        %v516 = vunpack.c.l.bf16 %v452
        %v517 = vunpack.c.l.bf16 %v453
        %v518 = vunpack.c.l.bf16 %v454
        %v519 = vunpack.c.l.bf16 %v455
        %v520 = vunpack.c.l.bf16 %v456
        %v521 = vunpack.c.l.bf16 %v457
        %v522 = vunpack.c.l.bf16 %v458
        %v523 = vunpack.c.l.bf16 %v459
        %v524 = vunpack.c.l.bf16 %v460
        %v525 = vunpack.c.l.bf16 %v461
        %v526 = vunpack.c.l.bf16 %v462
        %v527 = vunpack.c.l.bf16 %v463
        %v528 = vunpack.c.l.bf16 %v464
        %v529 = vunpack.c.l.bf16 %v465
        %v530 = vunpack.c.l.bf16 %v466
        %v531 = vunpack.c.l.bf16 %v467
        %v532 = vunpack.c.l.bf16 %v468
        %v533 = vunpack.c.l.bf16 %v469
        %v534 = vunpack.c.l.bf16 %v470
        %v535 = vunpack.c.l.bf16 %v471
        %v536 = vunpack.c.l.bf16 %v472
        %v537 = vunpack.c.l.bf16 %v473
        %v538 = vunpack.c.l.bf16 %v474
        %v539 = vunpack.c.l.bf16 %v475
        %v540 = vunpack.c.l.bf16 %v476
        %v541 = vunpack.c.l.bf16 %v477
        %v542 = vunpack.c.l.bf16 %v478
        %v543 = vunpack.c.l.bf16 %v479
        %v544 = vunpack.c.l.bf16 %v480
        %v545 = vunpack.c.l.bf16 %v481
        %v546 = vunpack.c.l.bf16 %v482
        %v547 = vunpack.c.l.bf16 %v483
        %v548 = vunpack.c.l.bf16 %v484
        %v549 = vunpack.c.l.bf16 %v485
        %v550 = vunpack.c.l.bf16 %v486
        %v551 = vunpack.c.l.bf16 %v487
        %v552 = vunpack.c.l.bf16 %v488
        %v553 = vunpack.c.l.bf16 %v489
        %v554 = vunpack.c.l.bf16 %v490
        %v555 = vunpack.c.l.bf16 %v491
        %v556 = vadd.f32 %v492, %v493
        %v557 = vadd.f32 %v556, %v494
        %v558 = vadd.f32 %v557, %v495
        %v559 = vadd.f32 %v558, %v496
        %v560 = vadd.f32 %v559, %v497
        %v561 = vadd.f32 %v560, %v498
        %v562 = vadd.f32 %v561, %v499
        %v563 = vrot.slane %v562, 4
        %v564 = vadd.f32 %v562, %v563
        %v565 = vrot.slane %v564, 2
        %v566 = vadd.f32 %v564, %v565
        %v567 = vrot.slane %v566, 1
        %v568 = vadd.f32 %v566, %v567
        %v569 = vadd.f32 %v500, %v501
        %v570 = vadd.f32 %v569, %v502
        %v571 = vadd.f32 %v570, %v503
        %v572 = vadd.f32 %v571, %v504
        %v573 = vadd.f32 %v572, %v505
        %v574 = vadd.f32 %v573, %v506
        %v575 = vadd.f32 %v574, %v507
        %v576 = vrot.slane %v575, 4
        %v577 = vadd.f32 %v575, %v576
        %v578 = vrot.slane %v577, 2
        %v579 = vadd.f32 %v577, %v578
        %v580 = vrot.slane %v579, 1
        %v581 = vadd.f32 %v579, %v580
        %v582 = vadd.f32 %v508, %v509
        %v583 = vadd.f32 %v582, %v510
        %v584 = vadd.f32 %v583, %v511
        %v585 = vadd.f32 %v584, %v512
        %v586 = vadd.f32 %v585, %v513
        %v587 = vadd.f32 %v586, %v514
        %v588 = vadd.f32 %v587, %v515
        %v589 = vrot.slane %v588, 4
        %v590 = vadd.f32 %v588, %v589
        %v591 = vrot.slane %v590, 2
        %v592 = vadd.f32 %v590, %v591
        %v593 = vrot.slane %v592, 1
        %v594 = vadd.f32 %v592, %v593
        %v595 = vadd.f32 %v516, %v517
        %v596 = vadd.f32 %v595, %v518
        %v597 = vadd.f32 %v596, %v519
        %v598 = vadd.f32 %v597, %v520
        %v599 = vadd.f32 %v598, %v521
        %v600 = vadd.f32 %v599, %v522
        %v601 = vadd.f32 %v600, %v523
        %v602 = vrot.slane %v601, 4
        %v603 = vadd.f32 %v601, %v602
        %v604 = vrot.slane %v603, 2
        %v605 = vadd.f32 %v603, %v604
        %v606 = vrot.slane %v605, 1
        %v607 = vadd.f32 %v605, %v606
        %v608 = vadd.f32 %v524, %v525
        %v609 = vadd.f32 %v608, %v526
        %v610 = vadd.f32 %v609, %v527
        %v611 = vadd.f32 %v610, %v528
        %v612 = vadd.f32 %v611, %v529
        %v613 = vadd.f32 %v612, %v530
        %v614 = vadd.f32 %v613, %v531
        %v615 = vrot.slane %v614, 4
        %v616 = vadd.f32 %v614, %v615
        %v617 = vrot.slane %v616, 2
        %v618 = vadd.f32 %v616, %v617
        %v619 = vrot.slane %v618, 1
        %v620 = vadd.f32 %v618, %v619
        %v621 = vadd.f32 %v532, %v533
        %v622 = vadd.f32 %v621, %v534
        %v623 = vadd.f32 %v622, %v535
        %v624 = vadd.f32 %v623, %v536
        %v625 = vadd.f32 %v624, %v537
        %v626 = vadd.f32 %v625, %v538
        %v627 = vadd.f32 %v626, %v539
        %v628 = vrot.slane %v627, 4
        %v629 = vadd.f32 %v627, %v628
        %v630 = vrot.slane %v629, 2
        %v631 = vadd.f32 %v629, %v630
        %v632 = vrot.slane %v631, 1
        %v633 = vadd.f32 %v631, %v632
        %v634 = vadd.f32 %v540, %v541
        %v635 = vadd.f32 %v634, %v542
        %v636 = vadd.f32 %v635, %v543
        %v637 = vadd.f32 %v636, %v544
        %v638 = vadd.f32 %v637, %v545
        %v639 = vadd.f32 %v638, %v546
        %v640 = vadd.f32 %v639, %v547
        %v641 = vrot.slane %v640, 4
        %v642 = vadd.f32 %v640, %v641
        %v643 = vrot.slane %v642, 2
        %v644 = vadd.f32 %v642, %v643
        %v645 = vrot.slane %v644, 1
        %v646 = vadd.f32 %v644, %v645
        %v647 = vadd.f32 %v548, %v549
        %v648 = vadd.f32 %v647, %v550
        %v649 = vadd.f32 %v648, %v551
        %v650 = vadd.f32 %v649, %v552
        %v651 = vadd.f32 %v650, %v553
        %v652 = vadd.f32 %v651, %v554
        %v653 = vadd.f32 %v652, %v555
        %v654 = vrot.slane %v653, 4
        %v655 = vadd.f32 %v653, %v654
        %v656 = vrot.slane %v655, 2
        %v657 = vadd.f32 %v655, %v656
        %v658 = vrot.slane %v657, 1
        %v659 = vadd.f32 %v657, %v658
        %v660 = vld [vmem:[%s367] sm:$0xf]
        %v661 = vld [vmem:[%s367 + $0x4] sm:$0xf]
        %v662 = vld [vmem:[%s367 + $0x8] sm:$0xf]
        %v663 = vld [vmem:[%s367 + $0xc] sm:$0xf]
        %v664 = vld [vmem:[%s367 + $0x10] sm:$0xf]
        %v665 = vld [vmem:[%s367 + $0x14] sm:$0xf]
        %v666 = vld [vmem:[%s367 + $0x18] sm:$0xf]
        %v667 = vld [vmem:[%s367 + $0x1c] sm:$0xf]
        %v668 = vunpack.c.l.bf16 %v660
        %v669 = vunpack.c.l.bf16 %v661
        %v670 = vunpack.c.l.bf16 %v662
        %v671 = vunpack.c.l.bf16 %v663
        %v672 = vunpack.c.l.bf16 %v664
        %v673 = vunpack.c.l.bf16 %v665
        %v674 = vunpack.c.l.bf16 %v666
        %v675 = vunpack.c.l.bf16 %v667
        %v676 = vld [vmem:[%s426] sm:$0xff]
        %v677 = vlaneseq
        %v678 = vshrl.u32 %v677, 7
        %v679 = vsub.s32 0, %v678
        %v680 = vrot.slane %v676, %v679
        %682 = vbcast.lane.b32.xlu0 %v680, 256
        %v683 = vpop.permute.xlu0 %682
        %v684 = vlaneseq
        %v685 = vshrl.u32 %v684, 7
        %v686 = vsub.s32 1, %v685
        %v687 = vrot.slane %v676, %v686
        %689 = vbcast.lane.b32.xlu0 %v687, 256
        %v690 = vpop.permute.xlu0 %689
        %v691 = vlaneseq
        %v692 = vshrl.u32 %v691, 7
        %v693 = vsub.s32 2, %v692
        %v694 = vrot.slane %v676, %v693
        %696 = vbcast.lane.b32.xlu0 %v694, 256
        %v697 = vpop.permute.xlu0 %696
        %v698 = vlaneseq
        %v699 = vshrl.u32 %v698, 7
        %v700 = vsub.s32 3, %v699
        %v701 = vrot.slane %v676, %v700
        %703 = vbcast.lane.b32.xlu0 %v701, 256
        %v704 = vpop.permute.xlu0 %703
        %v705 = vlaneseq
        %v706 = vshrl.u32 %v705, 7
        %v707 = vsub.s32 4, %v706
        %v708 = vrot.slane %v676, %v707
        %710 = vbcast.lane.b32.xlu0 %v708, 256
        %v711 = vpop.permute.xlu0 %710
        %v712 = vlaneseq
        %v713 = vshrl.u32 %v712, 7
        %v714 = vsub.s32 5, %v713
        %v715 = vrot.slane %v676, %v714
        %717 = vbcast.lane.b32.xlu0 %v715, 256
        %v718 = vpop.permute.xlu0 %717
        %v719 = vlaneseq
        %v720 = vshrl.u32 %v719, 7
        %v721 = vsub.s32 6, %v720
        %v722 = vrot.slane %v676, %v721
        %724 = vbcast.lane.b32.xlu0 %v722, 256
        %v725 = vpop.permute.xlu0 %724
        %v726 = vlaneseq
        %v727 = vshrl.u32 %v726, 7
        %v728 = vsub.s32 7, %v727
        %v729 = vrot.slane %v676, %v728
        %731 = vbcast.lane.b32.xlu0 %v729, 256
        %v732 = vpop.permute.xlu0 %731
        %v733 = vmul.f32 %v668, %v683
        %v734 = vmul.f32 %v669, %v690
        %v735 = vmul.f32 %v670, %v697
        %v736 = vmul.f32 %v671, %v704
        %v737 = vmul.f32 %v672, %v711
        %v738 = vmul.f32 %v673, %v718
        %v739 = vmul.f32 %v674, %v725
        %v740 = vmul.f32 %v675, %v732
        %v741 = vrot.slane %v733, 4
        %v742 = vadd.f32 %v733, %v741
        %v743 = vrot.slane %v742, 2
        %v744 = vadd.f32 %v742, %v743
        %v745 = vrot.slane %v744, 1
        %v746 = vadd.f32 %v744, %v745
        %v747 = vrot.slane %v734, 4
        %v748 = vadd.f32 %v734, %v747
        %v749 = vrot.slane %v748, 2
        %v750 = vadd.f32 %v748, %v749
        %v751 = vrot.slane %v750, 1
        %v752 = vadd.f32 %v750, %v751
        %v753 = vrot.slane %v735, 4
        %v754 = vadd.f32 %v735, %v753
        %v755 = vrot.slane %v754, 2
        %v756 = vadd.f32 %v754, %v755
        %v757 = vrot.slane %v756, 1
        %v758 = vadd.f32 %v756, %v757
        %v759 = vrot.slane %v736, 4
        %v760 = vadd.f32 %v736, %v759
        %v761 = vrot.slane %v760, 2
        %v762 = vadd.f32 %v760, %v761
        %v763 = vrot.slane %v762, 1
        %v764 = vadd.f32 %v762, %v763
        %v765 = vrot.slane %v737, 4
        %v766 = vadd.f32 %v737, %v765
        %v767 = vrot.slane %v766, 2
        %v768 = vadd.f32 %v766, %v767
        %v769 = vrot.slane %v768, 1
        %v770 = vadd.f32 %v768, %v769
        %v771 = vrot.slane %v738, 4
        %v772 = vadd.f32 %v738, %v771
        %v773 = vrot.slane %v772, 2
        %v774 = vadd.f32 %v772, %v773
        %v775 = vrot.slane %v774, 1
        %v776 = vadd.f32 %v774, %v775
        %v777 = vrot.slane %v739, 4
        %v778 = vadd.f32 %v739, %v777
        %v779 = vrot.slane %v778, 2
        %v780 = vadd.f32 %v778, %v779
        %v781 = vrot.slane %v780, 1
        %v782 = vadd.f32 %v780, %v781
        %v783 = vrot.slane %v740, 4
        %v784 = vadd.f32 %v740, %v783
        %v785 = vrot.slane %v784, 2
        %v786 = vadd.f32 %v784, %v785
        %v787 = vrot.slane %v786, 1
        %v788 = vadd.f32 %v786, %v787
        %v789 = vpack.c.bf16 %v746, %v746
        %v790 = vpack.c.bf16 %v752, %v752
        %v791 = vpack.c.bf16 %v758, %v758
        %v792 = vpack.c.bf16 %v764, %v764
        %v793 = vpack.c.bf16 %v770, %v770
        %v794 = vpack.c.bf16 %v776, %v776
        %v795 = vpack.c.bf16 %v782, %v782
        %v796 = vpack.c.bf16 %v788, %v788
        %v797 = vld [vmem:[#allocation7] sm:$0xf]
        %v798 = vld [vmem:[#allocation7 + $0x4] sm:$0xf]
        %v799 = vld [vmem:[#allocation7 + $0x8] sm:$0xf]
        %v800 = vld [vmem:[#allocation7 + $0xc] sm:$0xf]
        %v801 = vld [vmem:[#allocation7 + $0x10] sm:$0xf]
        %v802 = vld [vmem:[#allocation7 + $0x14] sm:$0xf]
        %v803 = vld [vmem:[#allocation7 + $0x18] sm:$0xf]
        %v804 = vld [vmem:[#allocation7 + $0x1c] sm:$0xf]
        %v805 = vld [vmem:[#allocation7 + $0x20] sm:$0xf]
        %v806 = vld [vmem:[#allocation7 + $0x24] sm:$0xf]
        %v807 = vld [vmem:[#allocation7 + $0x28] sm:$0xf]
        %v808 = vld [vmem:[#allocation7 + $0x2c] sm:$0xf]
        %v809 = vld [vmem:[#allocation7 + $0x30] sm:$0xf]
        %v810 = vld [vmem:[#allocation7 + $0x34] sm:$0xf]
        %v811 = vld [vmem:[#allocation7 + $0x38] sm:$0xf]
        %v812 = vld [vmem:[#allocation7 + $0x3c] sm:$0xf]
        %v813 = vld [vmem:[%s4] sm:$0x1]
        %v815 = vlaneseq
        %v816 = vshrl.u32 %v815, 7
        %v817 = vsub.s32 0, %v816
        %v818 = vrot.slane %v813, %v817
        %v828 = vunpack.c.l.b16 %v789
        %v829 = vunpack.c.l.b16 %v790
        %v830 = vunpack.c.l.b16 %v791
        %v831 = vunpack.c.l.b16 %v792
        %v832 = vunpack.c.l.b16 %v793
        %v833 = vunpack.c.l.b16 %v794
        %v834 = vunpack.c.l.b16 %v795
        %v835 = vunpack.c.l.b16 %v796
        %vm836 = vcmask 1041409
        %v837 = vsel %vm836, %v829, %v828
        %vm838 = vcmask 1042434
        %v839 = vsel %vm838, %v830, %v837
        %vm840 = vcmask 1043459
        %v841 = vsel %vm840, %v831, %v839
        %vm842 = vcmask 1044484
        %v843 = vsel %vm842, %v832, %v841
        %vm844 = vcmask 1045509
        %v845 = vsel %vm844, %v833, %v843
        %vm846 = vcmask 1046534
        %v847 = vsel %vm846, %v834, %v845
        %vm848 = vcmask 1047559
        %v849 = vsel %vm848, %v835, %v847
        %v850 = vpack.c.b16 %v849, %v849
        %v868 = vunpack.c.l.b16 %v797
        %v869 = vunpack.c.l.b16 %v798
        %v870 = vunpack.c.l.b16 %v799
        %v871 = vunpack.c.l.b16 %v800
        %v872 = vunpack.c.l.b16 %v801
        %v873 = vunpack.c.l.b16 %v802
        %v874 = vunpack.c.l.b16 %v803
        %v875 = vunpack.c.l.b16 %v804
        %v876 = vunpack.c.l.b16 %v805
        %v877 = vunpack.c.l.b16 %v806
        %v878 = vunpack.c.l.b16 %v807
        %v879 = vunpack.c.l.b16 %v808
        %v880 = vunpack.c.l.b16 %v809
        %v881 = vunpack.c.l.b16 %v810
        %v882 = vunpack.c.l.b16 %v811
        %v883 = vunpack.c.l.b16 %v812
        %v884 = vpack.c.b16 %v869, %v868
        %v885 = vpack.c.b16 %v871, %v870
        %v886 = vpack.c.b16 %v873, %v872
        %v887 = vpack.c.b16 %v875, %v874
        %v888 = vpack.c.b16 %v877, %v876
        %v889 = vpack.c.b16 %v879, %v878
        %v890 = vpack.c.b16 %v881, %v880
        %v891 = vpack.c.b16 %v883, %v882
        %900 = vmatprep.subr.bf16.mxu0 0
        %901 = vmatpush1.bf16.msra.mxu0 %v891
        %902 = vmatprep.subr.bf16.mxu0 0
        %903 = vmatpush1.bf16.msra.mxu0 %v890
        %904 = vmatprep.subr.bf16.mxu0 0
        %905 = vmatpush1.bf16.msra.mxu0 %v889
        %906 = vmatprep.subr.bf16.mxu0 0
        %907 = vmatpush1.bf16.msra.mxu0 %v888
        %908 = vmatprep.subr.bf16.mxu0 0
        %909 = vmatpush1.bf16.msra.mxu0 %v887
        %910 = vmatprep.subr.bf16.mxu0 0
        %911 = vmatpush1.bf16.msra.mxu0 %v886
        %912 = vmatprep.subr.bf16.mxu0 0
        %913 = vmatpush1.bf16.msra.mxu0 %v885
        %914 = vmatprep.subr.bf16.mxu0 0
        %915 = vmatpush1.bf16.msra.mxu0 %v884
        %916 = vmatprep.subr.bf16.mxu0 0
        %917 = vmatpush2.bf16.msra.mxu0 0
        %918 = vmatprep.subr.bf16.mxu0 0
        %919 = vmatpush2.bf16.msra.mxu0 0
        %920 = vmatprep.subr.bf16.mxu0 0
        %921 = vmatpush2.bf16.msra.mxu0 0
        %922 = vmatprep.subr.bf16.mxu0 0
        %923 = vmatpush2.bf16.msra.mxu0 0
        %924 = vmatprep.subr.bf16.mxu0 0
        %925 = vmatpush2.bf16.msra.mxu0 0
        %926 = vmatprep.subr.bf16.mxu0 0
        %927 = vmatpush2.bf16.msra.mxu0 0
        %928 = vmatprep.subr.bf16.mxu0 0
        %929 = vmatpush2.bf16.msra.mxu0 0
        %930 = vmatprep.subr.bf16.mxu0 0
        %931 = vmatpush2.bf16.msra.mxu0 0
        %932 = vmatprep.mubr.bf16.mxu0 0
        %933 = vmatmul.mubr.bf16.gmra.mxu0 %v850
        %v934 = vpop.f32.mrf.mxu0
        %v935 = vadd.f32 %v818, %v934
        %v936 = vpop.f32.mrf.mxu0
        %v937 = vpop.f32.mrf.mxu0
        %v938 = vpop.f32.mrf.mxu0
        %939 = vdwg.mxu0
        %v940 = vpack.c.bf16 %v568, %v568
        %v941 = vpack.c.bf16 %v581, %v581
        %v942 = vpack.c.bf16 %v594, %v594
        %v943 = vpack.c.bf16 %v607, %v607
        %v944 = vpack.c.bf16 %v620, %v620
        %v945 = vpack.c.bf16 %v633, %v633
        %v946 = vpack.c.bf16 %v646, %v646
        %v947 = vpack.c.bf16 %v659, %v659
        %v948 = vld [vmem:[#allocation8] sm:$0xff]
        %v949 = vld [vmem:[#allocation8 + $0x8] sm:$0xff]
        %v950 = vld [vmem:[#allocation8 + $0x10] sm:$0xff]
        %v951 = vld [vmem:[#allocation8 + $0x18] sm:$0xff]
        %v952 = vld [vmem:[#allocation8 + $0x20] sm:$0xff]
        %v953 = vld [vmem:[#allocation8 + $0x28] sm:$0xff]
        %v954 = vld [vmem:[#allocation8 + $0x30] sm:$0xff]
        %v955 = vld [vmem:[#allocation8 + $0x38] sm:$0xff]
        %v956 = vld [vmem:[#allocation8 + $0x40] sm:$0xff]
        %v957 = vld [vmem:[#allocation8 + $0x48] sm:$0xff]
        %v958 = vld [vmem:[#allocation8 + $0x50] sm:$0xff]
        %v959 = vld [vmem:[#allocation8 + $0x58] sm:$0xff]
        %v960 = vld [vmem:[#allocation8 + $0x60] sm:$0xff]
        %v961 = vld [vmem:[#allocation8 + $0x68] sm:$0xff]
        %v962 = vld [vmem:[#allocation8 + $0x70] sm:$0xff]
        %v963 = vld [vmem:[#allocation8 + $0x78] sm:$0xff]
        %v964 = vld [vmem:[#allocation8 + $0x80] sm:$0xff]
        %v965 = vld [vmem:[#allocation8 + $0x88] sm:$0xff]
        %v966 = vld [vmem:[#allocation8 + $0x90] sm:$0xff]
        %v967 = vld [vmem:[#allocation8 + $0x98] sm:$0xff]
        %v968 = vld [vmem:[#allocation8 + $0xa0] sm:$0xff]
        %v969 = vld [vmem:[#allocation8 + $0xa8] sm:$0xff]
        %v970 = vld [vmem:[#allocation8 + $0xb0] sm:$0xff]
        %v971 = vld [vmem:[#allocation8 + $0xb8] sm:$0xff]
        %v972 = vld [vmem:[#allocation8 + $0xc0] sm:$0xff]
        %v973 = vld [vmem:[#allocation8 + $0xc8] sm:$0xff]
        %v974 = vld [vmem:[#allocation8 + $0xd0] sm:$0xff]
        %v975 = vld [vmem:[#allocation8 + $0xd8] sm:$0xff]
        %v976 = vld [vmem:[#allocation8 + $0xe0] sm:$0xff]
        %v977 = vld [vmem:[#allocation8 + $0xe8] sm:$0xff]
        %v978 = vld [vmem:[#allocation8 + $0xf0] sm:$0xff]
        %v979 = vld [vmem:[#allocation8 + $0xf8] sm:$0xff]
        %v980 = vpack.c.bf16 %v935, %v935
        %v981 = vld [vmem:[#allocation10] sm:$0xff]
        %v982 = vld [vmem:[#allocation10 + $0x8] sm:$0xff]
        %v983 = vld [vmem:[#allocation10 + $0x10] sm:$0xff]
        %v984 = vld [vmem:[#allocation10 + $0x18] sm:$0xff]
        %v985 = vld [vmem:[#allocation10 + $0x20] sm:$0xff]
        %v986 = vld [vmem:[#allocation10 + $0x28] sm:$0xff]
        %v987 = vld [vmem:[#allocation10 + $0x30] sm:$0xff]
        %v988 = vld [vmem:[#allocation10 + $0x38] sm:$0xff]
        %v989 = vld [vmem:[#allocation10 + $0x40] sm:$0xff]
        %v990 = vld [vmem:[#allocation10 + $0x48] sm:$0xff]
        %v991 = vld [vmem:[#allocation10 + $0x50] sm:$0xff]
        %v992 = vld [vmem:[#allocation10 + $0x58] sm:$0xff]
        %v993 = vld [vmem:[#allocation10 + $0x60] sm:$0xff]
        %v994 = vld [vmem:[#allocation10 + $0x68] sm:$0xff]
        %v995 = vld [vmem:[#allocation10 + $0x70] sm:$0xff]
        %v996 = vld [vmem:[#allocation10 + $0x78] sm:$0xff]
        %v997 = vld [vmem:[#allocation10 + $0x80] sm:$0xff]
        %v998 = vld [vmem:[#allocation10 + $0x88] sm:$0xff]
        %v999 = vld [vmem:[#allocation10 + $0x90] sm:$0xff]
        %v1000 = vld [vmem:[#allocation10 + $0x98] sm:$0xff]
        %v1001 = vld [vmem:[#allocation10 + $0xa0] sm:$0xff]
        %v1002 = vld [vmem:[#allocation10 + $0xa8] sm:$0xff]
        %v1003 = vld [vmem:[#allocation10 + $0xb0] sm:$0xff]
        %v1004 = vld [vmem:[#allocation10 + $0xb8] sm:$0xff]
        %v1005 = vld [vmem:[#allocation10 + $0xc0] sm:$0xff]
        %v1006 = vld [vmem:[#allocation10 + $0xc8] sm:$0xff]
        %v1007 = vld [vmem:[#allocation10 + $0xd0] sm:$0xff]
        %v1008 = vld [vmem:[#allocation10 + $0xd8] sm:$0xff]
        %v1009 = vld [vmem:[#allocation10 + $0xe0] sm:$0xff]
        %v1010 = vld [vmem:[#allocation10 + $0xe8] sm:$0xff]
        %v1011 = vld [vmem:[#allocation10 + $0xf0] sm:$0xff]
        %v1012 = vld [vmem:[#allocation10 + $0xf8] sm:$0xff]
        %v1045 = vunpack.c.l.b16 %v981
        %v1046 = vunpack.c.h.b16 %v981
        %v1047 = vunpack.c.l.b16 %v982
        %v1048 = vunpack.c.h.b16 %v982
        %v1049 = vunpack.c.l.b16 %v983
        %v1050 = vunpack.c.h.b16 %v983
        %v1051 = vunpack.c.l.b16 %v984
        %v1052 = vunpack.c.h.b16 %v984
        %v1053 = vunpack.c.l.b16 %v985
        %v1054 = vunpack.c.h.b16 %v985
        %v1055 = vunpack.c.l.b16 %v986
        %v1056 = vunpack.c.h.b16 %v986
        %v1057 = vunpack.c.l.b16 %v987
        %v1058 = vunpack.c.h.b16 %v987
        %v1059 = vunpack.c.l.b16 %v988
        %v1060 = vunpack.c.h.b16 %v988
        %v1061 = vunpack.c.l.b16 %v989
        %v1062 = vunpack.c.h.b16 %v989
        %v1063 = vunpack.c.l.b16 %v990
        %v1064 = vunpack.c.h.b16 %v990
        %v1065 = vunpack.c.l.b16 %v991
        %v1066 = vunpack.c.h.b16 %v991
        %v1067 = vunpack.c.l.b16 %v992
        %v1068 = vunpack.c.h.b16 %v992
        %v1069 = vunpack.c.l.b16 %v993
        %v1070 = vunpack.c.h.b16 %v993
        %v1071 = vunpack.c.l.b16 %v994
        %v1072 = vunpack.c.h.b16 %v994
        %v1073 = vunpack.c.l.b16 %v995
        %v1074 = vunpack.c.h.b16 %v995
        %v1075 = vunpack.c.l.b16 %v996
        %v1076 = vunpack.c.h.b16 %v996
        %v1077 = vunpack.c.l.b16 %v997
        %v1078 = vunpack.c.h.b16 %v997
        %v1079 = vunpack.c.l.b16 %v998
        %v1080 = vunpack.c.h.b16 %v998
        %v1081 = vunpack.c.l.b16 %v999
        %v1082 = vunpack.c.h.b16 %v999
        %v1083 = vunpack.c.l.b16 %v1000
        %v1084 = vunpack.c.h.b16 %v1000
        %v1085 = vunpack.c.l.b16 %v1001
        %v1086 = vunpack.c.h.b16 %v1001
        %v1087 = vunpack.c.l.b16 %v1002
        %v1088 = vunpack.c.h.b16 %v1002
        %v1089 = vunpack.c.l.b16 %v1003
        %v1090 = vunpack.c.h.b16 %v1003
        %v1091 = vunpack.c.l.b16 %v1004
        %v1092 = vunpack.c.h.b16 %v1004
        %v1093 = vunpack.c.l.b16 %v1005
        %v1094 = vunpack.c.h.b16 %v1005
        %v1095 = vunpack.c.l.b16 %v1006
        %v1096 = vunpack.c.h.b16 %v1006
        %v1097 = vunpack.c.l.b16 %v1007
        %v1098 = vunpack.c.h.b16 %v1007
        %v1099 = vunpack.c.l.b16 %v1008
        %v1100 = vunpack.c.h.b16 %v1008
        %v1101 = vunpack.c.l.b16 %v1009
        %v1102 = vunpack.c.h.b16 %v1009
        %v1103 = vunpack.c.l.b16 %v1010
        %v1104 = vunpack.c.h.b16 %v1010
        %v1105 = vunpack.c.l.b16 %v1011
        %v1106 = vunpack.c.h.b16 %v1011
        %v1107 = vunpack.c.l.b16 %v1012
        %v1108 = vunpack.c.h.b16 %v1012
        %v1109 = vpack.c.b16 %v1049, %v1045
        %v1110 = vpack.c.b16 %v1050, %v1046
        %v1111 = vpack.c.b16 %v1051, %v1047
        %v1112 = vpack.c.b16 %v1052, %v1048
        %v1113 = vpack.c.b16 %v1057, %v1053
        %v1114 = vpack.c.b16 %v1058, %v1054
        %v1115 = vpack.c.b16 %v1059, %v1055
        %v1116 = vpack.c.b16 %v1060, %v1056
        %v1117 = vpack.c.b16 %v1065, %v1061
        %v1118 = vpack.c.b16 %v1066, %v1062
        %v1119 = vpack.c.b16 %v1067, %v1063
        %v1120 = vpack.c.b16 %v1068, %v1064
        %v1121 = vpack.c.b16 %v1073, %v1069
        %v1122 = vpack.c.b16 %v1074, %v1070
        %v1123 = vpack.c.b16 %v1075, %v1071
        %v1124 = vpack.c.b16 %v1076, %v1072
        %v1125 = vpack.c.b16 %v1081, %v1077
        %v1126 = vpack.c.b16 %v1082, %v1078
        %v1127 = vpack.c.b16 %v1083, %v1079
        %v1128 = vpack.c.b16 %v1084, %v1080
        %v1129 = vpack.c.b16 %v1089, %v1085
        %v1130 = vpack.c.b16 %v1090, %v1086
        %v1131 = vpack.c.b16 %v1091, %v1087
        %v1132 = vpack.c.b16 %v1092, %v1088
        %v1133 = vpack.c.b16 %v1097, %v1093
        %v1134 = vpack.c.b16 %v1098, %v1094
        %v1135 = vpack.c.b16 %v1099, %v1095
        %v1136 = vpack.c.b16 %v1100, %v1096
        %v1137 = vpack.c.b16 %v1105, %v1101
        %v1138 = vpack.c.b16 %v1106, %v1102
        %v1139 = vpack.c.b16 %v1107, %v1103
        %v1140 = vpack.c.b16 %v1108, %v1104
        %1173 = vmatprep.subr.bf16.mxu0 %v1138
        %1174 = vmatpush1.bf16.msra.mxu0 %v1137
        %1175 = vmatprep.subr.bf16.mxu0 %v1134
        %1176 = vmatpush1.bf16.msra.mxu0 %v1133
        %1177 = vmatprep.subr.bf16.mxu0 %v1130
        %1178 = vmatpush1.bf16.msra.mxu0 %v1129
        %1179 = vmatprep.subr.bf16.mxu0 %v1126
        %1180 = vmatpush1.bf16.msra.mxu0 %v1125
        %1181 = vmatprep.subr.bf16.mxu0 %v1122
        %1182 = vmatpush1.bf16.msra.mxu0 %v1121
        %1183 = vmatprep.subr.bf16.mxu0 %v1118
        %1184 = vmatpush1.bf16.msra.mxu0 %v1117
        %1185 = vmatprep.subr.bf16.mxu0 %v1114
        %1186 = vmatpush1.bf16.msra.mxu0 %v1113
        %1187 = vmatprep.subr.bf16.mxu0 %v1110
        %1188 = vmatpush1.bf16.msra.mxu0 %v1109
        %1189 = vmatprep.subr.bf16.mxu0 0
        %1190 = vmatpush2.bf16.msra.mxu0 0
        %1191 = vmatprep.subr.bf16.mxu0 0
        %1192 = vmatpush2.bf16.msra.mxu0 0
        %1193 = vmatprep.subr.bf16.mxu0 0
        %1194 = vmatpush2.bf16.msra.mxu0 0
        %1195 = vmatprep.subr.bf16.mxu0 0
        %1196 = vmatpush2.bf16.msra.mxu0 0
        %1197 = vmatprep.subr.bf16.mxu0 0
        %1198 = vmatpush2.bf16.msra.mxu0 0
        %1199 = vmatprep.subr.bf16.mxu0 0
        %1200 = vmatpush2.bf16.msra.mxu0 0
        %1201 = vmatprep.subr.bf16.mxu0 0
        %1202 = vmatpush2.bf16.msra.mxu0 0
        %1203 = vmatprep.subr.bf16.mxu0 0
        %1204 = vmatpush2.bf16.msra.mxu0 0
        %1205 = vmatprep.mubr.bf16.mxu0 0
        %1206 = vmatmul.mubr.bf16.gmra.mxu0 %v980
        %v1207 = vpop.f32.mrf.mxu0
        %v1208 = vadd.f32 0.0, %v1207
        %v1209 = vpop.f32.mrf.mxu0
        %v1210 = vadd.f32 0.0, %v1209
        %v1211 = vpop.f32.mrf.mxu0
        %v1212 = vpop.f32.mrf.mxu0
        %1213 = vdwg.mxu0
        %1214 = vmatprep.subr.bf16.mxu0 %v1140
        %1215 = vmatpush1.bf16.msra.mxu0 %v1139
        %1216 = vmatprep.subr.bf16.mxu0 %v1136
        %1217 = vmatpush1.bf16.msra.mxu0 %v1135
        %1218 = vmatprep.subr.bf16.mxu0 %v1132
        %1219 = vmatpush1.bf16.msra.mxu0 %v1131
        %1220 = vmatprep.subr.bf16.mxu0 %v1128
        %1221 = vmatpush1.bf16.msra.mxu0 %v1127
        %1222 = vmatprep.subr.bf16.mxu0 %v1124
        %1223 = vmatpush1.bf16.msra.mxu0 %v1123
        %1224 = vmatprep.subr.bf16.mxu0 %v1120
        %1225 = vmatpush1.bf16.msra.mxu0 %v1119
        %1226 = vmatprep.subr.bf16.mxu0 %v1116
        %1227 = vmatpush1.bf16.msra.mxu0 %v1115
        %1228 = vmatprep.subr.bf16.mxu0 %v1112
        %1229 = vmatpush1.bf16.msra.mxu0 %v1111
        %1230 = vmatprep.subr.bf16.mxu0 0
        %1231 = vmatpush2.bf16.msra.mxu0 0
        %1232 = vmatprep.subr.bf16.mxu0 0
        %1233 = vmatpush2.bf16.msra.mxu0 0
        %1234 = vmatprep.subr.bf16.mxu0 0
        %1235 = vmatpush2.bf16.msra.mxu0 0
        %1236 = vmatprep.subr.bf16.mxu0 0
        %1237 = vmatpush2.bf16.msra.mxu0 0
        %1238 = vmatprep.subr.bf16.mxu0 0
        %1239 = vmatpush2.bf16.msra.mxu0 0
        %1240 = vmatprep.subr.bf16.mxu0 0
        %1241 = vmatpush2.bf16.msra.mxu0 0
        %1242 = vmatprep.subr.bf16.mxu0 0
        %1243 = vmatpush2.bf16.msra.mxu0 0
        %1244 = vmatprep.subr.bf16.mxu0 0
        %1245 = vmatpush2.bf16.msra.mxu0 0
        %1246 = vmatprep.mubr.bf16.mxu0 0
        %1247 = vmatmul.mubr.bf16.gmra.mxu0 %v980
        %v1248 = vpop.f32.mrf.mxu0
        %v1249 = vadd.f32 0.0, %v1248
        %v1250 = vpop.f32.mrf.mxu0
        %v1251 = vadd.f32 0.0, %v1250
        %v1252 = vpop.f32.mrf.mxu0
        %v1253 = vpop.f32.mrf.mxu0
        %1254 = vdwg.mxu0
        %v1263 = vunpack.c.l.b16 %v940
        %v1264 = vunpack.c.l.b16 %v941
        %v1265 = vunpack.c.l.b16 %v942
        %v1266 = vunpack.c.l.b16 %v943
        %v1267 = vunpack.c.l.b16 %v944
        %v1268 = vunpack.c.l.b16 %v945
        %v1269 = vunpack.c.l.b16 %v946
        %v1270 = vunpack.c.l.b16 %v947
        %v1271 = vsel %vm836, %v1264, %v1263
        %v1272 = vsel %vm838, %v1265, %v1271
        %v1273 = vsel %vm840, %v1266, %v1272
        %v1274 = vsel %vm842, %v1267, %v1273
        %v1275 = vsel %vm844, %v1268, %v1274
        %v1276 = vsel %vm846, %v1269, %v1275
        %v1277 = vsel %vm848, %v1270, %v1276
        %v1278 = vpack.c.b16 %v1277, %v1277
        %v1312 = vunpack.c.l.b16 %v948
        %v1313 = vunpack.c.h.b16 %v948
        %v1314 = vunpack.c.l.b16 %v949
        %v1315 = vunpack.c.h.b16 %v949
        %v1316 = vunpack.c.l.b16 %v950
        %v1317 = vunpack.c.h.b16 %v950
        %v1318 = vunpack.c.l.b16 %v951
        %v1319 = vunpack.c.h.b16 %v951
        %v1320 = vunpack.c.l.b16 %v952
        %v1321 = vunpack.c.h.b16 %v952
        %v1322 = vunpack.c.l.b16 %v953
        %v1323 = vunpack.c.h.b16 %v953
        %v1324 = vunpack.c.l.b16 %v954
        %v1325 = vunpack.c.h.b16 %v954
        %v1326 = vunpack.c.l.b16 %v955
        %v1327 = vunpack.c.h.b16 %v955
        %v1328 = vunpack.c.l.b16 %v956
        %v1329 = vunpack.c.h.b16 %v956
        %v1330 = vunpack.c.l.b16 %v957
        %v1331 = vunpack.c.h.b16 %v957
        %v1332 = vunpack.c.l.b16 %v958
        %v1333 = vunpack.c.h.b16 %v958
        %v1334 = vunpack.c.l.b16 %v959
        %v1335 = vunpack.c.h.b16 %v959
        %v1336 = vunpack.c.l.b16 %v960
        %v1337 = vunpack.c.h.b16 %v960
        %v1338 = vunpack.c.l.b16 %v961
        %v1339 = vunpack.c.h.b16 %v961
        %v1340 = vunpack.c.l.b16 %v962
        %v1341 = vunpack.c.h.b16 %v962
        %v1342 = vunpack.c.l.b16 %v963
        %v1343 = vunpack.c.h.b16 %v963
        %v1344 = vunpack.c.l.b16 %v964
        %v1345 = vunpack.c.h.b16 %v964
        %v1346 = vunpack.c.l.b16 %v965
        %v1347 = vunpack.c.h.b16 %v965
        %v1348 = vunpack.c.l.b16 %v966
        %v1349 = vunpack.c.h.b16 %v966
        %v1350 = vunpack.c.l.b16 %v967
        %v1351 = vunpack.c.h.b16 %v967
        %v1352 = vunpack.c.l.b16 %v968
        %v1353 = vunpack.c.h.b16 %v968
        %v1354 = vunpack.c.l.b16 %v969
        %v1355 = vunpack.c.h.b16 %v969
        %v1356 = vunpack.c.l.b16 %v970
        %v1357 = vunpack.c.h.b16 %v970
        %v1358 = vunpack.c.l.b16 %v971
        %v1359 = vunpack.c.h.b16 %v971
        %v1360 = vunpack.c.l.b16 %v972
        %v1361 = vunpack.c.h.b16 %v972
        %v1362 = vunpack.c.l.b16 %v973
        %v1363 = vunpack.c.h.b16 %v973
        %v1364 = vunpack.c.l.b16 %v974
        %v1365 = vunpack.c.h.b16 %v974
        %v1366 = vunpack.c.l.b16 %v975
        %v1367 = vunpack.c.h.b16 %v975
        %v1368 = vunpack.c.l.b16 %v976
        %v1369 = vunpack.c.h.b16 %v976
        %v1370 = vunpack.c.l.b16 %v977
        %v1371 = vunpack.c.h.b16 %v977
        %v1372 = vunpack.c.l.b16 %v978
        %v1373 = vunpack.c.h.b16 %v978
        %v1374 = vunpack.c.l.b16 %v979
        %v1375 = vunpack.c.h.b16 %v979
        %v1376 = vpack.c.b16 %v1316, %v1312
        %v1377 = vpack.c.b16 %v1317, %v1313
        %v1378 = vpack.c.b16 %v1318, %v1314
        %v1379 = vpack.c.b16 %v1319, %v1315
        %v1380 = vpack.c.b16 %v1324, %v1320
        %v1381 = vpack.c.b16 %v1325, %v1321
        %v1382 = vpack.c.b16 %v1326, %v1322
        %v1383 = vpack.c.b16 %v1327, %v1323
        %v1384 = vpack.c.b16 %v1332, %v1328
        %v1385 = vpack.c.b16 %v1333, %v1329
        %v1386 = vpack.c.b16 %v1334, %v1330
        %v1387 = vpack.c.b16 %v1335, %v1331
        %v1388 = vpack.c.b16 %v1340, %v1336
        %v1389 = vpack.c.b16 %v1341, %v1337
        %v1390 = vpack.c.b16 %v1342, %v1338
        %v1391 = vpack.c.b16 %v1343, %v1339
        %v1392 = vpack.c.b16 %v1348, %v1344
        %v1393 = vpack.c.b16 %v1349, %v1345
        %v1394 = vpack.c.b16 %v1350, %v1346
        %v1395 = vpack.c.b16 %v1351, %v1347
        %v1396 = vpack.c.b16 %v1356, %v1352
        %v1397 = vpack.c.b16 %v1357, %v1353
        %v1398 = vpack.c.b16 %v1358, %v1354
        %v1399 = vpack.c.b16 %v1359, %v1355
        %v1400 = vpack.c.b16 %v1364, %v1360
        %v1401 = vpack.c.b16 %v1365, %v1361
        %v1402 = vpack.c.b16 %v1366, %v1362
        %v1403 = vpack.c.b16 %v1367, %v1363
        %v1404 = vpack.c.b16 %v1372, %v1368
        %v1405 = vpack.c.b16 %v1373, %v1369
        %v1406 = vpack.c.b16 %v1374, %v1370
        %v1407 = vpack.c.b16 %v1375, %v1371
        %1440 = vmatprep.subr.bf16.mxu0 %v1405
        %1441 = vmatpush1.bf16.msra.mxu0 %v1404
        %1442 = vmatprep.subr.bf16.mxu0 %v1401
        %1443 = vmatpush1.bf16.msra.mxu0 %v1400
        %1444 = vmatprep.subr.bf16.mxu0 %v1397
        %1445 = vmatpush1.bf16.msra.mxu0 %v1396
        %1446 = vmatprep.subr.bf16.mxu0 %v1393
        %1447 = vmatpush1.bf16.msra.mxu0 %v1392
        %1448 = vmatprep.subr.bf16.mxu0 %v1389
        %1449 = vmatpush1.bf16.msra.mxu0 %v1388
        %1450 = vmatprep.subr.bf16.mxu0 %v1385
        %1451 = vmatpush1.bf16.msra.mxu0 %v1384
        %1452 = vmatprep.subr.bf16.mxu0 %v1381
        %1453 = vmatpush1.bf16.msra.mxu0 %v1380
        %1454 = vmatprep.subr.bf16.mxu0 %v1377
        %1455 = vmatpush1.bf16.msra.mxu0 %v1376
        %1456 = vmatprep.subr.bf16.mxu0 0
        %1457 = vmatpush2.bf16.msra.mxu0 0
        %1458 = vmatprep.subr.bf16.mxu0 0
        %1459 = vmatpush2.bf16.msra.mxu0 0
        %1460 = vmatprep.subr.bf16.mxu0 0
        %1461 = vmatpush2.bf16.msra.mxu0 0
        %1462 = vmatprep.subr.bf16.mxu0 0
        %1463 = vmatpush2.bf16.msra.mxu0 0
        %1464 = vmatprep.subr.bf16.mxu0 0
        %1465 = vmatpush2.bf16.msra.mxu0 0
        %1466 = vmatprep.subr.bf16.mxu0 0
        %1467 = vmatpush2.bf16.msra.mxu0 0
        %1468 = vmatprep.subr.bf16.mxu0 0
        %1469 = vmatpush2.bf16.msra.mxu0 0
        %1470 = vmatprep.subr.bf16.mxu0 0
        %1471 = vmatpush2.bf16.msra.mxu0 0
        %1472 = vmatprep.mubr.bf16.mxu0 0
        %1473 = vmatmul.mubr.bf16.gmra.mxu0 %v1278
        %v1474 = vpop.f32.mrf.mxu0
        %v1475 = vadd.f32 %v1208, %v1474
        %v1476 = vpop.f32.mrf.mxu0
        %v1477 = vadd.f32 %v1210, %v1476
        %v1478 = vpop.f32.mrf.mxu0
        %v1479 = vpop.f32.mrf.mxu0
        %1480 = vdwg.mxu0
        %1481 = vmatprep.subr.bf16.mxu0 %v1407
        %1482 = vmatpush1.bf16.msra.mxu0 %v1406
        %1483 = vmatprep.subr.bf16.mxu0 %v1403
        %1484 = vmatpush1.bf16.msra.mxu0 %v1402
        %1485 = vmatprep.subr.bf16.mxu0 %v1399
        %1486 = vmatpush1.bf16.msra.mxu0 %v1398
        %1487 = vmatprep.subr.bf16.mxu0 %v1395
        %1488 = vmatpush1.bf16.msra.mxu0 %v1394
        %1489 = vmatprep.subr.bf16.mxu0 %v1391
        %1490 = vmatpush1.bf16.msra.mxu0 %v1390
        %1491 = vmatprep.subr.bf16.mxu0 %v1387
        %1492 = vmatpush1.bf16.msra.mxu0 %v1386
        %1493 = vmatprep.subr.bf16.mxu0 %v1383
        %1494 = vmatpush1.bf16.msra.mxu0 %v1382
        %1495 = vmatprep.subr.bf16.mxu0 %v1379
        %1496 = vmatpush1.bf16.msra.mxu0 %v1378
        %1497 = vmatprep.subr.bf16.mxu0 0
        %1498 = vmatpush2.bf16.msra.mxu0 0
        %1499 = vmatprep.subr.bf16.mxu0 0
        %1500 = vmatpush2.bf16.msra.mxu0 0
        %1501 = vmatprep.subr.bf16.mxu0 0
        %1502 = vmatpush2.bf16.msra.mxu0 0
        %1503 = vmatprep.subr.bf16.mxu0 0
        %1504 = vmatpush2.bf16.msra.mxu0 0
        %1505 = vmatprep.subr.bf16.mxu0 0
        %1506 = vmatpush2.bf16.msra.mxu0 0
        %1507 = vmatprep.subr.bf16.mxu0 0
        %1508 = vmatpush2.bf16.msra.mxu0 0
        %1509 = vmatprep.subr.bf16.mxu0 0
        %1510 = vmatpush2.bf16.msra.mxu0 0
        %1511 = vmatprep.subr.bf16.mxu0 0
        %1512 = vmatpush2.bf16.msra.mxu0 0
        %1513 = vmatprep.mubr.bf16.mxu0 0
        %1514 = vmatmul.mubr.bf16.gmra.mxu0 %v1278
        %v1515 = vpop.f32.mrf.mxu0
        %v1516 = vadd.f32 %v1249, %v1515
        %v1517 = vpop.f32.mrf.mxu0
        %v1518 = vadd.f32 %v1251, %v1517
        %v1519 = vpop.f32.mrf.mxu0
        %v1520 = vpop.f32.mrf.mxu0
        %1521 = vdwg.mxu0
        %v1522 = vld [vmem:[%s7] sm:$0xf]
        %v1524 = vlaneseq
        %v1525 = vshrl.u32 %v1524, 7
        %v1526 = vsub.s32 0, %v1525
        %v1527 = vrot.slane %v1522, %v1526
        %v1528 = vlaneseq
        %v1529 = vshrl.u32 %v1528, 7
        %v1530 = vsub.s32 1, %v1529
        %v1531 = vrot.slane %v1522, %v1530
        %v1532 = vlaneseq
        %v1533 = vshrl.u32 %v1532, 7
        %v1534 = vsub.s32 2, %v1533
        %v1535 = vrot.slane %v1522, %v1534
        %v1536 = vlaneseq
        %v1537 = vshrl.u32 %v1536, 7
        %v1538 = vsub.s32 3, %v1537
        %v1539 = vrot.slane %v1522, %v1538
        %v1544 = vadd.f32 %v1475, %v1527
        %v1545 = vadd.f32 %v1477, %v1531
        %v1546 = vadd.f32 %v1516, %v1535
        %v1547 = vadd.f32 %v1518, %v1539
        %v1548 = vmul.f32 %v1544, %v1544
        %v1549 = vmul.f32 %v1545, %v1545
        %v1550 = vmul.f32 %v1546, %v1546
        %v1551 = vmul.f32 %v1547, %v1547
        %v1552 = vadd.f32 %v1548, %v1549
        %v1553 = vadd.f32 %v1552, %v1550
        %v1554 = vadd.f32 %v1553, %v1551
        %1555 = vadd.xlane.f32.xlu0 %v1554
        %v1556 = vpop.xlane.xlu0 %1555
        %v1557 = vmax.f32 %v1556, 1e-24
        %v1558 = vrsqrt.pop %v1557
        %v1559 = vmul.f32 %v1544, %v1558
        %v1560 = vmul.f32 %v1545, %v1558
        %v1561 = vmul.f32 %v1546, %v1558
        %v1562 = vmul.f32 %v1547, %v1558
        %1563 = vst [vmem:[%s420] sm:$0xff] %v1559
        %1564 = vst [vmem:[%s420 + $0x8] sm:$0xff] %v1560
        %1565 = vst [vmem:[%s420 + $0x10] sm:$0xff] %v1561
        %1566 = vst [vmem:[%s420 + $0x18] sm:$0xff] %v1562
        %s1567 = sand.u32 %s220, 1
        %s1568 = scalar_lea.sflag [#allocation4], %s1567
        %s1569 = sand.u32 %s220, 1
        %s1570 = smul.addr %s1569, 32
        %s1571 = scalar_lea.vmem [#allocation11], %s1570
        // Predicated region
        $region73: #{tpu_custom_call.1} parent=51 // pred_check
          %p1572 = pneg %p230
        $region74: #{tpu_custom_call.1} parent=51 // pred_check_branch
          %1574 = sbr.rel (%p1572) target = $region76
        $region75: #{tpu_custom_call.1} parent=51 // pred_region
          %s1576 = ssub.s32 512, 512
          %1577 = vsyncadd %s1568, %s1576
          %s1578 = smul.addr %s29, 4
          %s1579 = smul.addr %s1578, 128
          %s1580 = scalar_lea.hbm %s8, %s1579
          %s1582 = sshll.u32 %s1571, 4
          %s1583 = int_to_ptr.vmem [resolvable:$true] %s1582
          %1585 = dma.vmem_to_hbm [thread:$0]  %s1583, 512, %s1580, %s1568
        $region76: #{tpu_custom_call.1} parent=51 // pred_fallthru
          _
      $region52: #{tpu_custom_call.1} parent=5 // pred_fallthru
        _
      %p1586 = scmp.le.s32.totalorder 2, %s24
      // Predicated region
      $region77: #{tpu_custom_call.1} parent=5 // pred_check
        %p1587 = pneg %p1586
      $region78: #{tpu_custom_call.1} parent=5 // pred_check_branch
        %1589 = sbr.rel (%p1587) target = $region80
      $region79: #{tpu_custom_call.1} parent=5 // pred_region
        %s1590 = ssub.s32 %s24, 2
        // Predicated region
        $region81: #{tpu_custom_call.1} parent=79 // pred_check
          %p1591 = pneg %p236
        $region82: #{tpu_custom_call.1} parent=79 // pred_check_branch
          %1593 = sbr.rel (%p1591) target = $region84
        $region83: #{tpu_custom_call.1} parent=79 // pred_region
          %s1594 = sand.u32 %s221, 1
          %s1595 = scalar_lea.sflag [#allocation4], %s1594
          %s1596 = sand.u32 %s221, 1
          %s1597 = smul.addr %s1596, 32
          %s1598 = scalar_lea.vmem [#allocation11], %s1597
          %1599 = dma.done %s1595, 512
        $region84: #{tpu_custom_call.1} parent=79 // pred_fallthru
          _
      $region80: #{tpu_custom_call.1} parent=5 // pred_fallthru
        _
    $region6: #{tpu_custom_call.1} parent=1 // loop_footer
      %s28 = sadd.s32 1, %s24
    $region7: #{tpu_custom_call.1} parent=1 // loop_footer_branch
      %23 = sbr.rel target = $region3
    $region8: #{tpu_custom_call.1} parent=1 // loop_exit
      _
    %1600 = vsyncpa [#allocation3], 1
    %s1601 = scalar_lea.sflag [#allocation3], 1
    %1602 = vsyncpa %s1601, 1
    %1603 = vsyncpa [#allocation6], 1
    %s1604 = scalar_lea.sflag [#allocation6], 1
    %1605 = vsyncpa %s1604, 1
    %1606 = vsyncpa [#allocation9], 1
    %1607 = vsyncpa [#allocation4], 1
    %s1608 = scalar_lea.sflag [#allocation4], 1
    %1609 = vsyncpa %s1608, 1

</llo_original>
